<compile_context>
chip_gen: v5e
topology: v5e:2x2
jax: 0.10.0
libtpu: 0.0.40
codegen_flags: <defaults>
</compile_context>

<pallas_src>
import functools
import math

import jax
import jax.numpy as jnp
from jax import lax
from jax.experimental import pallas as pl
from jax.experimental.pallas import tpu as pltpu

LN_EPS = 1e-5

# 2-D dot_general dimension-number shorthands (MXU-friendly, transposes folded
# into the contraction instead of explicit XLU transposes).
_NN = (((1,), (0,)), ((), ()))   # A   @ B
_TN = (((0,), (0,)), ((), ()))   # A^T @ B
_NT = (((1,), (1,)), ((), ()))   # A   @ B^T


def _gelu_exact(x):
    # PyTorch nn.GELU() default = exact erf formulation.
    return 0.5 * x * (1.0 + lax.erf(x * (1.0 / math.sqrt(2.0))))


def _layernorm(v, gamma, beta):
    # LayerNorm over the last (hidden) axis, biased variance, eps=1e-5.
    mu = jnp.mean(v, axis=-1, keepdims=True)
    var = jnp.mean((v - mu) ** 2, axis=-1, keepdims=True)
    return (v - mu) * lax.rsqrt(var + LN_EPS) * gamma + beta


def mixer_block_kernel(
    x_ref,                      # (Bt, P, H)
    g1_ref, b1_ref,             # (1, H)   pre-norm gamma/beta
    g2_ref, b2_ref,             # (1, H)   post-norm gamma/beta
    wt1_ref, bt1_ref,           # (P, TH), (1, TH)   token-mixer fc1
    wt2t_ref, bt2_ref,          # (P, TH), (P, 1)    token-mixer fc2 (weight pre-transposed)
    wc1_ref, bc1_ref,           # (H, CH), (1, CH)   channel-mixer fc1
    wc2_ref, bc2_ref,           # (CH, H), (1, H)    channel-mixer fc2
    o_ref,                      # (Bt, P, H)
    *, compute_dtype,
):
    Bt, P, H = x_ref.shape
    f32 = jnp.float32

    # Collapse batch rows into the matmul row dimension (cheap: P % 8 == 0,
    # pure leading-dim merge, no lane movement).
    x2 = x_ref[...].astype(f32).reshape(Bt * P, H)                  # (Bt*P, H)

    # ---- pre-norm + token mixing (MLP over the patch axis, residual) ----
    y2 = _layernorm(x2, g1_ref[...], b1_ref[...])                   # f32
    yc = y2.astype(compute_dtype)
    wt1 = wt1_ref[...]
    wt2t = wt2t_ref[...]
    bt1 = bt1_ref[...]
    bt2 = bt2_ref[...]

    rows = []
    for b in range(Bt):                                             # static unroll, Bt small
        y_b = yc[b * P:(b + 1) * P, :]                              # (P, H)
        # u[h, t] = sum_p y_b[p, h] * wt1[p, t]   (transpose folded into TN contraction)
        u = lax.dot_general(y_b, wt1, _TN, preferred_element_type=f32)      # (H, TH)
        u = _gelu_exact(u + bt1).astype(compute_dtype)
        # tm[p, h] = sum_t wt2[t, p] * u[h, t]    (weight pre-transposed -> NT contraction)
        tm = lax.dot_general(wt2t, u, _NT, preferred_element_type=f32)      # (P, H)
        rows.append(tm + bt2)                                       # bias over the patch axis
    tm2 = jnp.concatenate(rows, axis=0) if Bt > 1 else rows[0]      # (Bt*P, H)
    # TODO(synk): dropout layers are treated as identity (inference mode).
    xr2 = x2 + tm2                                                  # token-mixer residual

    # ---- post-norm + channel mixing (MLP over the hidden axis, residual) ----
    z2 = _layernorm(xr2, g2_ref[...], b2_ref[...]).astype(compute_dtype)
    c = lax.dot_general(z2, wc1_ref[...], _NN, preferred_element_type=f32)  # (Bt*P, CH)
    c = _gelu_exact(c + bc1_ref[...]).astype(compute_dtype)
    c = lax.dot_general(c, wc2_ref[...], _NN, preferred_element_type=f32)   # (Bt*P, H)
    out2 = xr2 + c + bc2_ref[...]                                   # channel-mixer residual

    o_ref[...] = out2.reshape(Bt, P, H).astype(o_ref.dtype)


def _choose_block_b(B, max_block_b=8):
    """Largest divisor of B (<= max_block_b) that still leaves >= 2 grid steps
    (so v7x's two TensorCores both get work); falls back to 1."""
    best = 1
    for bt in range(1, min(B, max_block_b) + 1):
        if B % bt == 0 and B // bt >= 2:
            best = bt
    return best


def _round_up(n, m):
    return ((n + m - 1) // m) * m


def _vmem_bytes_estimate(blocks):
    """Conservative (8,128)-padded, double-buffered VMEM footprint."""
    total = 0
    for shape, dtype in blocks:
        shape = list(shape)
        if len(shape) < 2:
            shape = [1] * (2 - len(shape)) + shape
        padded = shape[:-2] + [_round_up(shape[-2], 8), _round_up(shape[-1], 128)]
        n = 1
        for s in padded:
            n *= int(s)
        total += 2 * n * jnp.dtype(dtype).itemsize
    return total


def mixer_block(x, params, *, compute_dtype=jnp.bfloat16, block_b=None):
    """x: (B, P, H) float32. params: dict of weights (see init_params)."""
    B, P, H = x.shape
    TH = params["wt1"].shape[1]
    CH = params["wc1"].shape[1]

    if block_b is None:
        block_b = _choose_block_b(B)
    assert B % block_b == 0, "block_b must divide the batch size"
    grid = (B // block_b,)

    # Weights in the MXU compute dtype (bf16 halves weight DMA); biases and
    # LayerNorm params stay f32.  Token-mixer fc2 weight is pre-transposed once
    # here so the kernel never transposes activations.
    wt1 = params["wt1"].astype(compute_dtype)                 # (P, TH)
    wt2t = jnp.transpose(params["wt2"]).astype(compute_dtype)  # (P, TH)
    wc1 = params["wc1"].astype(compute_dtype)                 # (H, CH)
    wc2 = params["wc2"].astype(compute_dtype)                 # (CH, H)
    bt2 = params["bt2"].reshape(P, 1)                         # column bias over the patch axis

    operands = (
        x,
        params["g1"], params["b1"], params["g2"], params["b2"],
        wt1, params["bt1"], wt2t, bt2,
        wc1, params["bc1"], wc2, params["bc2"],
    )

    # Weights/biases use constant index maps -> the pipeline keeps the same
    # block resident across grid steps (no per-step re-DMA).  On v7x,
    # pipeline_mode=pl.Buffered(1) would additionally single-buffer them; left
    # off here for portability.
    const = lambda a: pl.BlockSpec(a.shape, lambda i: (0,) * a.ndim)
    in_specs = [pl.BlockSpec((block_b, P, H), lambda i: (i, 0, 0))] + [
        const(a) for a in operands[1:]
    ]
    out_spec = pl.BlockSpec((block_b, P, H), lambda i: (i, 0, 0))

    # Explicit VMEM budget (only when the conservative default would be tight).
    blocks = [((block_b, P, H), x.dtype), ((block_b, P, H), x.dtype)] + [
        (a.shape, a.dtype) for a in operands[1:]
    ]
    vmem_est = _vmem_bytes_estimate(blocks)
    vmem_limit = None
    if vmem_est > 14 * 1024 * 1024:
        vmem_limit = min(int(vmem_est * 1.25), 64 * 1024 * 1024)   # v7x physical VMEM cap

    flops = 4 * B * P * H * (TH + CH)                   # 2 matmuls each for token & channel MLPs
    transcendentals = B * (H * TH + P * CH)             # erf evaluations
    bytes_accessed = int(
        2 * B * P * H * x.dtype.itemsize
        + sum(int(a.size) * a.dtype.itemsize for a in operands[1:])
    )
    cost = pl.CostEstimate(flops=int(flops), transcendentals=int(transcendentals),
                           bytes_accessed=bytes_accessed)

    kernel = functools.partial(mixer_block_kernel, compute_dtype=compute_dtype)
    return pl.pallas_call(
        kernel,
        out_shape=jax.ShapeDtypeStruct((B, P, H), x.dtype),
        grid_spec=pltpu.PrefetchScalarGridSpec(
            num_scalar_prefetch=0,
            grid=grid,
            in_specs=in_specs,
            out_specs=out_spec,
        ),
        compiler_params=pltpu.CompilerParams(
            dimension_semantics=("parallel",),
            vmem_limit_bytes=vmem_limit,
        ),
        cost_estimate=cost,
    )(*operands)


def mixer_block_reference(x, params, compute_dtype=jnp.float32):
    """Pure-JAX reference; compute_dtype lets it mirror the kernel's matmul precision."""
    g1, b1 = params["g1"][0], params["b1"][0]
    g2, b2 = params["g2"][0], params["b2"][0]
    cast = lambda a: a.astype(compute_dtype)
    hi = lax.Precision.HIGHEST

    def ln(v, g, b):
        mu = jnp.mean(v, axis=-1, keepdims=True)
        var = jnp.mean((v - mu) ** 2, axis=-1, keepdims=True)
        return (v - mu) * lax.rsqrt(var + LN_EPS) * g + b

    y = ln(x, g1, b1)
    yt = jnp.swapaxes(y, 1, 2)                                                 # (B, H, P)
    t = jnp.einsum("bhp,pt->bht", cast(yt), cast(params["wt1"]),
                   preferred_element_type=jnp.float32, precision=hi) + params["bt1"][0]
    t = _gelu_exact(t)
    t = jnp.einsum("bht,tp->bhp", cast(t), cast(params["wt2"]),
                   preferred_element_type=jnp.float32, precision=hi) + params["bt2"][0]
    x = x + jnp.swapaxes(t, 1, 2)
    z = ln(x, g2, b2)
    c = jnp.einsum("bph,hc->bpc", cast(z), cast(params["wc1"]),
                   preferred_element_type=jnp.float32, precision=hi) + params["bc1"][0]
    c = _gelu_exact(c)
    c = jnp.einsum("bpc,ch->bph", cast(c), cast(params["wc2"]),
                   preferred_element_type=jnp.float32, precision=hi) + params["bc2"][0]
    return x + c


def init_params(key, P, H, TH, CH):
    ks = jax.random.split(key, 8)
    scale = lambda fan_in: 1.0 / math.sqrt(fan_in)
    return {
        # LayerNorm params
        "g1": jnp.ones((1, H), jnp.float32),
        "b1": jnp.zeros((1, H), jnp.float32),
        "g2": jnp.ones((1, H), jnp.float32),
        "b2": jnp.zeros((1, H), jnp.float32),
        # TokenMixer: Linear(P -> TH), Linear(TH -> P)
        "wt1": jax.random.uniform(ks[0], (P, TH), jnp.float32, -scale(P), scale(P)),
        "bt1": jax.random.uniform(ks[1], (1, TH), jnp.float32, -scale(P), scale(P)),
        "wt2": jax.random.uniform(ks[2], (TH, P), jnp.float32, -scale(TH), scale(TH)),
        "bt2": jax.random.uniform(ks[3], (1, P), jnp.float32, -scale(TH), scale(TH)),
        # ChannelMixer: Linear(H -> CH), Linear(CH -> H)
        "wc1": jax.random.uniform(ks[4], (H, CH), jnp.float32, -scale(H), scale(H)),
        "bc1": jax.random.uniform(ks[5], (1, CH), jnp.float32, -scale(H), scale(H)),
        "wc2": jax.random.uniform(ks[6], (CH, H), jnp.float32, -scale(CH), scale(CH)),
        "bc2": jax.random.uniform(ks[7], (1, H), jnp.float32, -scale(CH), scale(CH)),
    }


if __name__ == "__main__":
    # Module hyperparameters (small):
    #   image_input_size=(8, 8), nb_channels=1, patch_size=(2, 2)
    #     -> nb_patch = 8*8*1 / (2*2) = 16
    #   hidden_size=32, token_hidden_size=8, channel_hidden_size=64, dropout=0.0
    B, P, H, TH, CH = 4, 16, 32, 8, 64

    key = jax.random.PRNGKey(0)
    k_x, k_p = jax.random.split(key)
    x = jax.random.normal(k_x, (B, P, H), jnp.float32)
    params = init_params(k_p, P, H, TH, CH)

    # Default path: bf16 matmul inputs, f32 accumulation (block_b=2, grid=(2,)).
    out = jax.block_until_ready(mixer_block(x, params))
    assert out.shape == (B, P, H)

    # Check against a precision-matched reference (tight) ...
    ref_bf16 = jax.block_until_ready(
        mixer_block_reference(x, params, compute_dtype=jnp.bfloat16))
    assert jnp.allclose(out, ref_bf16, atol=1e-2, rtol=1e-2), "mismatch (bf16-matched ref)"

    # ... and against the full-f32 reference (coarse bound for the bf16 path).
    ref_f32 = jax.block_until_ready(mixer_block_reference(x, params))
    assert jnp.allclose(out, ref_f32, atol=1e-1, rtol=1e-1), "mismatch vs f32 reference"

    # Full-f32 matmul path (exact PyTorch numerics) must track the f32 reference tightly.
    out_f32 = jax.block_until_ready(mixer_block(x, params, compute_dtype=jnp.float32))
    assert jnp.allclose(out_f32, ref_f32, atol=1e-4, rtol=1e-4), "mismatch (f32 path)"

    print("KERNEL_OK")
</pallas_src>

<mosaic_0001>
module attributes {stable_mosaic.version = 11 : i64} {
  func.func @mixer_block_kernel(%arg0: i32, %arg1: memref<2x16x32xf32, #tpu.memory_space<vmem>>, %arg2: memref<1x32xf32, #tpu.memory_space<vmem>>, %arg3: memref<1x32xf32, #tpu.memory_space<vmem>>, %arg4: memref<1x32xf32, #tpu.memory_space<vmem>>, %arg5: memref<1x32xf32, #tpu.memory_space<vmem>>, %arg6: memref<16x8xbf16, #tpu.memory_space<vmem>>, %arg7: memref<1x8xf32, #tpu.memory_space<vmem>>, %arg8: memref<16x8xbf16, #tpu.memory_space<vmem>>, %arg9: memref<16x1xf32, #tpu.memory_space<vmem>>, %arg10: memref<32x64xbf16, #tpu.memory_space<vmem>>, %arg11: memref<1x64xf32, #tpu.memory_space<vmem>>, %arg12: memref<64x32xbf16, #tpu.memory_space<vmem>>, %arg13: memref<1x32xf32, #tpu.memory_space<vmem>>, %arg14: memref<2x16x32xf32, #tpu.memory_space<vmem>>) attributes {dimension_semantics = [#tpu.dimension_semantics<parallel>], iteration_bounds = array<i64: 2>, scalar_prefetch = 0 : i64, scratch_operands = 0 : i64, tpu.core_type = #tpu.core_type<tc>, window_params = [{transform_indices = @transform_0, window_bounds = array<i64: 2, 16, 32>}, {pipeline_mode = #tpu.pipeline_mode<synchronous>, transform_indices = @transform_1, window_bounds = array<i64: 1, 32>}, {pipeline_mode = #tpu.pipeline_mode<synchronous>, transform_indices = @transform_2, window_bounds = array<i64: 1, 32>}, {pipeline_mode = #tpu.pipeline_mode<synchronous>, transform_indices = @transform_3, window_bounds = array<i64: 1, 32>}, {pipeline_mode = #tpu.pipeline_mode<synchronous>, transform_indices = @transform_4, window_bounds = array<i64: 1, 32>}, {pipeline_mode = #tpu.pipeline_mode<synchronous>, transform_indices = @transform_5, window_bounds = array<i64: 16, 8>}, {pipeline_mode = #tpu.pipeline_mode<synchronous>, transform_indices = @transform_6, window_bounds = array<i64: 1, 8>}, {pipeline_mode = #tpu.pipeline_mode<synchronous>, transform_indices = @transform_7, window_bounds = array<i64: 16, 8>}, {pipeline_mode = #tpu.pipeline_mode<synchronous>, transform_indices = @transform_8, window_bounds = array<i64: 16, 1>}, {pipeline_mode = #tpu.pipeline_mode<synchronous>, transform_indices = @transform_9, window_bounds = array<i64: 32, 64>}, {pipeline_mode = #tpu.pipeline_mode<synchronous>, transform_indices = @transform_10, window_bounds = array<i64: 1, 64>}, {pipeline_mode = #tpu.pipeline_mode<synchronous>, transform_indices = @transform_11, window_bounds = array<i64: 64, 32>}, {pipeline_mode = #tpu.pipeline_mode<synchronous>, transform_indices = @transform_12, window_bounds = array<i64: 1, 32>}, {transform_indices = @transform_13, window_bounds = array<i64: 2, 16, 32>}]} {
    %c0 = arith.constant 0 : index
    %c0_0 = arith.constant 0 : index
    %c0_1 = arith.constant 0 : index
    %0 = vector.load %arg1[%c0, %c0_0, %c0_1] : memref<2x16x32xf32, #tpu.memory_space<vmem>>, vector<2x16x32xf32>
    %1 = vector.shape_cast %0 : vector<2x16x32xf32> to vector<32x32xf32>
    %c0_2 = arith.constant 0 : index
    %c0_3 = arith.constant 0 : index
    %2 = vector.load %arg2[%c0_2, %c0_3] : memref<1x32xf32, #tpu.memory_space<vmem>>, vector<1x32xf32>
    %c0_4 = arith.constant 0 : index
    %c0_5 = arith.constant 0 : index
    %3 = vector.load %arg3[%c0_4, %c0_5] : memref<1x32xf32, #tpu.memory_space<vmem>>, vector<1x32xf32>
    %cst = arith.constant dense<0.000000e+00> : vector<32xf32>
    %4 = vector.multi_reduction <add>, %1, %cst [1] : vector<32x32xf32> to vector<32xf32>
    %5 = vector.shape_cast %4 : vector<32xf32> to vector<32x1xf32>
    %cst_6 = arith.constant 3.200000e+01 : f32
    %6 = vector.broadcast %cst_6 : f32 to vector<32x1xf32>
    %7 = arith.divf %5, %6 : vector<32x1xf32>
    %8 = vector.broadcast %7 : vector<32x1xf32> to vector<32x32xf32>
    %9 = arith.subf %1, %8 : vector<32x32xf32>
    %10 = arith.mulf %9, %9 : vector<32x32xf32>
    %cst_7 = arith.constant dense<0.000000e+00> : vector<32xf32>
    %11 = vector.multi_reduction <add>, %10, %cst_7 [1] : vector<32x32xf32> to vector<32xf32>
    %12 = vector.shape_cast %11 : vector<32xf32> to vector<32x1xf32>
    %cst_8 = arith.constant 3.200000e+01 : f32
    %13 = vector.broadcast %cst_8 : f32 to vector<32x1xf32>
    %14 = arith.divf %12, %13 : vector<32x1xf32>
    %15 = vector.broadcast %7 : vector<32x1xf32> to vector<32x32xf32>
    %16 = arith.subf %1, %15 : vector<32x32xf32>
    %cst_9 = arith.constant 9.99999974E-6 : f32
    %17 = vector.broadcast %cst_9 : f32 to vector<32x1xf32>
    %18 = arith.addf %14, %17 : vector<32x1xf32>
    %19 = math.rsqrt %18 : vector<32x1xf32>
    %20 = vector.broadcast %19 : vector<32x1xf32> to vector<32x32xf32>
    %21 = arith.mulf %16, %20 : vector<32x32xf32>
    %22 = vector.broadcast %2 : vector<1x32xf32> to vector<32x32xf32>
    %23 = arith.mulf %21, %22 : vector<32x32xf32>
    %24 = vector.broadcast %3 : vector<1x32xf32> to vector<32x32xf32>
    %25 = arith.addf %23, %24 : vector<32x32xf32>
    %26 = arith.truncf %25 : vector<32x32xf32> to vector<32x32xbf16>
    %c0_10 = arith.constant 0 : index
    %c0_11 = arith.constant 0 : index
    %27 = vector.load %arg6[%c0_10, %c0_11] : memref<16x8xbf16, #tpu.memory_space<vmem>>, vector<16x8xbf16>
    %c0_12 = arith.constant 0 : index
    %c0_13 = arith.constant 0 : index
    %28 = vector.load %arg8[%c0_12, %c0_13] : memref<16x8xbf16, #tpu.memory_space<vmem>>, vector<16x8xbf16>
    %c0_14 = arith.constant 0 : index
    %c0_15 = arith.constant 0 : index
    %29 = vector.load %arg7[%c0_14, %c0_15] : memref<1x8xf32, #tpu.memory_space<vmem>>, vector<1x8xf32>
    %c0_16 = arith.constant 0 : index
    %c0_17 = arith.constant 0 : index
    %30 = vector.load %arg9[%c0_16, %c0_17] : memref<16x1xf32, #tpu.memory_space<vmem>>, vector<16x1xf32>
    %31 = vector.extract_strided_slice %26 {offsets = [0, 0], sizes = [16, 32], strides = [1, 1]} : vector<32x32xbf16> to vector<16x32xbf16>
    %cst_18 = arith.constant dense<0.000000e+00> : vector<32x8xf32>
    %32 = tpu.matmul %31, %27, %cst_18 {dimension_numbers = #tpu.dot_dimension_numbers<[0], [0], [1], [1], [0, 1, 1, 1], [], []>} : vector<16x32xbf16>, vector<16x8xbf16>, vector<32x8xf32> -> vector<32x8xf32>
    %33 = vector.broadcast %29 : vector<1x8xf32> to vector<32x8xf32>
    %34 = arith.addf %32, %33 : vector<32x8xf32>
    %cst_19 = arith.constant 5.000000e-01 : f32
    %35 = vector.broadcast %cst_19 : f32 to vector<32x8xf32>
    %36 = arith.mulf %35, %34 : vector<32x8xf32>
    %cst_20 = arith.constant 0.707106769 : f32
    %37 = vector.broadcast %cst_20 : f32 to vector<32x8xf32>
    %38 = arith.mulf %34, %37 : vector<32x8xf32>
    %39 = math.erf %38 : vector<32x8xf32>
    %cst_21 = arith.constant 1.000000e+00 : f32
    %40 = vector.broadcast %cst_21 : f32 to vector<32x8xf32>
    %41 = arith.addf %40, %39 : vector<32x8xf32>
    %42 = arith.mulf %36, %41 : vector<32x8xf32>
    %43 = arith.truncf %42 : vector<32x8xf32> to vector<32x8xbf16>
    %cst_22 = arith.constant dense<0.000000e+00> : vector<16x32xf32>
    %44 = tpu.matmul %28, %43, %cst_22 {dimension_numbers = #tpu.dot_dimension_numbers<[1], [1], [0], [0], [0, 0, 1, 0], [], []>} : vector<16x8xbf16>, vector<32x8xbf16>, vector<16x32xf32> -> vector<16x32xf32>
    %45 = vector.broadcast %30 : vector<16x1xf32> to vector<16x32xf32>
    %46 = arith.addf %44, %45 : vector<16x32xf32>
    %47 = vector.extract_strided_slice %26 {offsets = [16, 0], sizes = [16, 32], strides = [1, 1]} : vector<32x32xbf16> to vector<16x32xbf16>
    %cst_23 = arith.constant dense<0.000000e+00> : vector<32x8xf32>
    %48 = tpu.matmul %47, %27, %cst_23 {dimension_numbers = #tpu.dot_dimension_numbers<[0], [0], [1], [1], [0, 1, 1, 1], [], []>} : vector<16x32xbf16>, vector<16x8xbf16>, vector<32x8xf32> -> vector<32x8xf32>
    %49 = vector.broadcast %29 : vector<1x8xf32> to vector<32x8xf32>
    %50 = arith.addf %48, %49 : vector<32x8xf32>
    %cst_24 = arith.constant 5.000000e-01 : f32
    %51 = vector.broadcast %cst_24 : f32 to vector<32x8xf32>
    %52 = arith.mulf %51, %50 : vector<32x8xf32>
    %cst_25 = arith.constant 0.707106769 : f32
    %53 = vector.broadcast %cst_25 : f32 to vector<32x8xf32>
    %54 = arith.mulf %50, %53 : vector<32x8xf32>
    %55 = math.erf %54 : vector<32x8xf32>
    %cst_26 = arith.constant 1.000000e+00 : f32
    %56 = vector.broadcast %cst_26 : f32 to vector<32x8xf32>
    %57 = arith.addf %56, %55 : vector<32x8xf32>
    %58 = arith.mulf %52, %57 : vector<32x8xf32>
    %59 = arith.truncf %58 : vector<32x8xf32> to vector<32x8xbf16>
    %cst_27 = arith.constant dense<0.000000e+00> : vector<16x32xf32>
    %60 = tpu.matmul %28, %59, %cst_27 {dimension_numbers = #tpu.dot_dimension_numbers<[1], [1], [0], [0], [0, 0, 1, 0], [], []>} : vector<16x8xbf16>, vector<32x8xbf16>, vector<16x32xf32> -> vector<16x32xf32>
    %61 = vector.broadcast %30 : vector<16x1xf32> to vector<16x32xf32>
    %62 = arith.addf %60, %61 : vector<16x32xf32>
    %63 = tpu.concatenate %46, %62 in 0 : vector<16x32xf32>, vector<16x32xf32> -> vector<32x32xf32>
    %64 = arith.addf %1, %63 : vector<32x32xf32>
    %c0_28 = arith.constant 0 : index
    %c0_29 = arith.constant 0 : index
    %65 = vector.load %arg4[%c0_28, %c0_29] : memref<1x32xf32, #tpu.memory_space<vmem>>, vector<1x32xf32>
    %c0_30 = arith.constant 0 : index
    %c0_31 = arith.constant 0 : index
    %66 = vector.load %arg5[%c0_30, %c0_31] : memref<1x32xf32, #tpu.memory_space<vmem>>, vector<1x32xf32>
    %cst_32 = arith.constant dense<0.000000e+00> : vector<32xf32>
    %67 = vector.multi_reduction <add>, %64, %cst_32 [1] : vector<32x32xf32> to vector<32xf32>
    %68 = vector.shape_cast %67 : vector<32xf32> to vector<32x1xf32>
    %cst_33 = arith.constant 3.200000e+01 : f32
    %69 = vector.broadcast %cst_33 : f32 to vector<32x1xf32>
    %70 = arith.divf %68, %69 : vector<32x1xf32>
    %71 = vector.broadcast %70 : vector<32x1xf32> to vector<32x32xf32>
    %72 = arith.subf %64, %71 : vector<32x32xf32>
    %73 = arith.mulf %72, %72 : vector<32x32xf32>
    %cst_34 = arith.constant dense<0.000000e+00> : vector<32xf32>
    %74 = vector.multi_reduction <add>, %73, %cst_34 [1] : vector<32x32xf32> to vector<32xf32>
    %75 = vector.shape_cast %74 : vector<32xf32> to vector<32x1xf32>
    %cst_35 = arith.constant 3.200000e+01 : f32
    %76 = vector.broadcast %cst_35 : f32 to vector<32x1xf32>
    %77 = arith.divf %75, %76 : vector<32x1xf32>
    %78 = vector.broadcast %70 : vector<32x1xf32> to vector<32x32xf32>
    %79 = arith.subf %64, %78 : vector<32x32xf32>
    %cst_36 = arith.constant 9.99999974E-6 : f32
    %80 = vector.broadcast %cst_36 : f32 to vector<32x1xf32>
    %81 = arith.addf %77, %80 : vector<32x1xf32>
    %82 = math.rsqrt %81 : vector<32x1xf32>
    %83 = vector.broadcast %82 : vector<32x1xf32> to vector<32x32xf32>
    %84 = arith.mulf %79, %83 : vector<32x32xf32>
    %85 = vector.broadcast %65 : vector<1x32xf32> to vector<32x32xf32>
    %86 = arith.mulf %84, %85 : vector<32x32xf32>
    %87 = vector.broadcast %66 : vector<1x32xf32> to vector<32x32xf32>
    %88 = arith.addf %86, %87 : vector<32x32xf32>
    %89 = arith.truncf %88 : vector<32x32xf32> to vector<32x32xbf16>
    %c0_37 = arith.constant 0 : index
    %c0_38 = arith.constant 0 : index
    %90 = vector.load %arg10[%c0_37, %c0_38] : memref<32x64xbf16, #tpu.memory_space<vmem>>, vector<32x64xbf16>
    %cst_39 = arith.constant dense<0.000000e+00> : vector<32x64xf32>
    %91 = tpu.matmul %89, %90, %cst_39 {dimension_numbers = #tpu.dot_dimension_numbers<[1], [0], [0], [1], [0, 0, 1, 1], [], []>} : vector<32x32xbf16>, vector<32x64xbf16>, vector<32x64xf32> -> vector<32x64xf32>
    %c0_40 = arith.constant 0 : index
    %c0_41 = arith.constant 0 : index
    %92 = vector.load %arg11[%c0_40, %c0_41] : memref<1x64xf32, #tpu.memory_space<vmem>>, vector<1x64xf32>
    %93 = vector.broadcast %92 : vector<1x64xf32> to vector<32x64xf32>
    %94 = arith.addf %91, %93 : vector<32x64xf32>
    %cst_42 = arith.constant 5.000000e-01 : f32
    %95 = vector.broadcast %cst_42 : f32 to vector<32x64xf32>
    %96 = arith.mulf %95, %94 : vector<32x64xf32>
    %cst_43 = arith.constant 0.707106769 : f32
    %97 = vector.broadcast %cst_43 : f32 to vector<32x64xf32>
    %98 = arith.mulf %94, %97 : vector<32x64xf32>
    %99 = math.erf %98 : vector<32x64xf32>
    %cst_44 = arith.constant 1.000000e+00 : f32
    %100 = vector.broadcast %cst_44 : f32 to vector<32x64xf32>
    %101 = arith.addf %100, %99 : vector<32x64xf32>
    %102 = arith.mulf %96, %101 : vector<32x64xf32>
    %103 = arith.truncf %102 : vector<32x64xf32> to vector<32x64xbf16>
    %c0_45 = arith.constant 0 : index
    %c0_46 = arith.constant 0 : index
    %104 = vector.load %arg12[%c0_45, %c0_46] : memref<64x32xbf16, #tpu.memory_space<vmem>>, vector<64x32xbf16>
    %cst_47 = arith.constant dense<0.000000e+00> : vector<32x32xf32>
    %105 = tpu.matmul %103, %104, %cst_47 {dimension_numbers = #tpu.dot_dimension_numbers<[1], [0], [0], [1], [0, 0, 1, 1], [], []>} : vector<32x64xbf16>, vector<64x32xbf16>, vector<32x32xf32> -> vector<32x32xf32>
    %106 = arith.addf %64, %105 : vector<32x32xf32>
    %c0_48 = arith.constant 0 : index
    %c0_49 = arith.constant 0 : index
    %107 = vector.load %arg13[%c0_48, %c0_49] : memref<1x32xf32, #tpu.memory_space<vmem>>, vector<1x32xf32>
    %108 = vector.broadcast %107 : vector<1x32xf32> to vector<32x32xf32>
    %109 = arith.addf %106, %108 : vector<32x32xf32>
    %110 = vector.shape_cast %109 : vector<32x32xf32> to vector<2x16x32xf32>
    %c0_50 = arith.constant 0 : index
    %c0_51 = arith.constant 0 : index
    %c0_52 = arith.constant 0 : index
    %111 = vector.load %arg14[%c0_50, %c0_51, %c0_52] : memref<2x16x32xf32, #tpu.memory_space<vmem>>, vector<2x16x32xf32>
    tpu.vector_store %arg14[%c0_50, %c0_51, %c0_52], %110 {strides = array<i32>} : memref<2x16x32xf32, #tpu.memory_space<vmem>>, vector<2x16x32xf32>,
    return
  }
  func.func @transform_0(%arg0: i32) -> (i32, i32, i32) {
    %c0_i32 = arith.constant 0 : i32
    %c0_i32_0 = arith.constant 0 : i32
    %c0_i32_1 = arith.constant 0 : i32
    return %arg0, %c0_i32, %c0_i32_0 : i32, i32, i32
  }
  func.func @transform_1(%arg0: i32) -> (i32, i32) {
    %c0_i32 = arith.constant 0 : i32
    %c0_i32_0 = arith.constant 0 : i32
    %c0_i32_1 = arith.constant 0 : i32
    return %c0_i32, %c0_i32_0 : i32, i32
  }
  func.func @transform_2(%arg0: i32) -> (i32, i32) {
    %c0_i32 = arith.constant 0 : i32
    %c0_i32_0 = arith.constant 0 : i32
    %c0_i32_1 = arith.constant 0 : i32
    return %c0_i32, %c0_i32_0 : i32, i32
  }
  func.func @transform_3(%arg0: i32) -> (i32, i32) {
    %c0_i32 = arith.constant 0 : i32
    %c0_i32_0 = arith.constant 0 : i32
    %c0_i32_1 = arith.constant 0 : i32
    return %c0_i32, %c0_i32_0 : i32, i32
  }
  func.func @transform_4(%arg0: i32) -> (i32, i32) {
    %c0_i32 = arith.constant 0 : i32
    %c0_i32_0 = arith.constant 0 : i32
    %c0_i32_1 = arith.constant 0 : i32
    return %c0_i32, %c0_i32_0 : i32, i32
  }
  func.func @transform_5(%arg0: i32) -> (i32, i32) {
    %c0_i32 = arith.constant 0 : i32
    %c0_i32_0 = arith.constant 0 : i32
    %c0_i32_1 = arith.constant 0 : i32
    return %c0_i32, %c0_i32_0 : i32, i32
  }
  func.func @transform_6(%arg0: i32) -> (i32, i32) {
    %c0_i32 = arith.constant 0 : i32
    %c0_i32_0 = arith.constant 0 : i32
    %c0_i32_1 = arith.constant 0 : i32
    return %c0_i32, %c0_i32_0 : i32, i32
  }
  func.func @transform_7(%arg0: i32) -> (i32, i32) {
    %c0_i32 = arith.constant 0 : i32
    %c0_i32_0 = arith.constant 0 : i32
    %c0_i32_1 = arith.constant 0 : i32
    return %c0_i32, %c0_i32_0 : i32, i32
  }
  func.func @transform_8(%arg0: i32) -> (i32, i32) {
    %c0_i32 = arith.constant 0 : i32
    %c0_i32_0 = arith.constant 0 : i32
    %c0_i32_1 = arith.constant 0 : i32
    return %c0_i32, %c0_i32_0 : i32, i32
  }
  func.func @transform_9(%arg0: i32) -> (i32, i32) {
    %c0_i32 = arith.constant 0 : i32
    %c0_i32_0 = arith.constant 0 : i32
    %c0_i32_1 = arith.constant 0 : i32
    return %c0_i32, %c0_i32_0 : i32, i32
  }
  func.func @transform_10(%arg0: i32) -> (i32, i32) {
    %c0_i32 = arith.constant 0 : i32
    %c0_i32_0 = arith.constant 0 : i32
    %c0_i32_1 = arith.constant 0 : i32
    return %c0_i32, %c0_i32_0 : i32, i32
  }
  func.func @transform_11(%arg0: i32) -> (i32, i32) {
    %c0_i32 = arith.constant 0 : i32
    %c0_i32_0 = arith.constant 0 : i32
    %c0_i32_1 = arith.constant 0 : i32
    return %c0_i32, %c0_i32_0 : i32, i32
  }
  func.func @transform_12(%arg0: i32) -> (i32, i32) {
    %c0_i32 = arith.constant 0 : i32
    %c0_i32_0 = arith.constant 0 : i32
    %c0_i32_1 = arith.constant 0 : i32
    return %c0_i32, %c0_i32_0 : i32, i32
  }
  func.func @transform_13(%arg0: i32) -> (i32, i32, i32) {
    %c0_i32 = arith.constant 0 : i32
    %c0_i32_0 = arith.constant 0 : i32
    %c0_i32_1 = arith.constant 0 : i32
    return %arg0, %c0_i32, %c0_i32_0 : i32, i32, i32
  }
}

</mosaic_0001>

<llo_original>
// kernel: tpu_custom_call.1
$region0: #{tpu_custom_call.1}
  #allocation0 [shape = 'u32[]', space=smem, size = 0x4, offset = 0x4, fixed_abs, tag = 'smem constant byte address 0x4 - core index']
  #allocation1 [shape = 'u32[72,128]{1,0:T(1,128)}', space=vmem, size = 0x9000, scoped, tag = 'internal scratch']
  %s0 = inlined_call_operand.vmem [shape: f32[4,16,32], index: 0, kind: input, shape index: {}]
  %s1 = inlined_call_operand.hbm [shape: f32[1,32], index: 1, kind: input, shape index: {}]
  %s2 = inlined_call_operand.hbm [shape: f32[1,32], index: 2, kind: input, shape index: {}]
  %s3 = inlined_call_operand.hbm [shape: f32[1,32], index: 3, kind: input, shape index: {}]
  %s4 = inlined_call_operand.hbm [shape: f32[1,32], index: 4, kind: input, shape index: {}]
  %s5 = inlined_call_operand.vmem [shape: bf16[16,8], index: 5, kind: input, shape index: {}]
  %s6 = inlined_call_operand.hbm [shape: f32[1,8], index: 6, kind: input, shape index: {}]
  %s7 = inlined_call_operand.vmem [shape: bf16[16,8], index: 7, kind: input, shape index: {}]
  %s8 = inlined_call_operand.vmem [shape: f32[16,1], index: 8, kind: input, shape index: {}]
  %s9 = inlined_call_operand.vmem [shape: bf16[32,64], index: 9, kind: input, shape index: {}]
  %s10 = inlined_call_operand.vmem [shape: f32[1,64], index: 10, kind: input, shape index: {}]
  %s11 = inlined_call_operand.vmem [shape: bf16[64,32], index: 11, kind: input, shape index: {}]
  %s12 = inlined_call_operand.vmem [shape: f32[1,32], index: 12, kind: input, shape index: {}]
  %s13 = inlined_call_operand.hbm [shape: f32[4,16,32], index: 13, kind: output, shape index: {}]
  %s14 = sld [smem:[#allocation0]]
  $region105: #{tpu_custom_call.1} parent=0
    _
  %s16 = ssub.s32 1, %s14
  %s17 = scalar_select 0, %s16, %s14
  $region1: #{tpu_custom_call.1} parent=0
    #allocation2 [shape = 'u8[512]{0}', space=vmem, size = 0x400, scoped, tag = 'input window, operand 1, single buffered']
    #allocation3 [shape = 's32[2]{0}', space=sflag, size = 0x8, scoped, tag = 'scoped memory for tpu_custom_call.1']
    #allocation4 [shape = 's32[2]{0}', space=sflag, size = 0x8, scoped, tag = 'scoped memory for tpu_custom_call.1']
    #allocation5 [shape = 'u8[512]{0}', space=vmem, size = 0x400, scoped, tag = 'input window, operand 2, single buffered']
    #allocation6 [shape = 's32[1]{0}', space=sflag, size = 0x4, scoped, tag = 'scoped memory for tpu_custom_call.1']
    #allocation7 [shape = 'u8[512]{0}', space=vmem, size = 0x400, scoped, tag = 'input window, operand 3, single buffered']
    #allocation8 [shape = 'u8[512]{0}', space=vmem, size = 0x400, scoped, tag = 'input window, operand 4, single buffered']
    #allocation9 [shape = 's32[1]{0}', space=sflag, size = 0x4, scoped, tag = 'scoped memory for tpu_custom_call.1']
    #allocation10 [shape = 'u8[512]{0}', space=vmem, size = 0x400, scoped, tag = 'input window, operand 6, single buffered']
    #allocation11 [shape = 'u8[32768]{0}', space=vmem, size = 0x8000, scoped, tag = 'output window, operand 0']
    %18 = vsyncpa [#allocation3], 0
    %19 = vsyncpa [#allocation6], 0
    %20 = vsyncpa [#allocation9], 0
    %21 = vsyncpa [#allocation4], 0
    %s22 = scalar_lea.sflag [#allocation4], 1
    %23 = vsyncpa %s22, 0
    loop: start=0, step=1, limit=4
    $region2: #{tpu_custom_call.1} parent=1 // loop_pre_header
      _
    $region3: #{tpu_custom_call.1} parent=1 // loop_header
      %s25 = sphi 0, %s29
      %p26 = scmp.ge.s32.totalorder %s25, 4
      %s35 = sphi 0, %s37
      %s38 = sphi 0, %s35
      %s39 = sphi 0, %s38
      %s55 = sphi 0, %s39
      %s59 = sphi 0, %s59
      %s61 = sphi 0, %s59
      %s62 = sphi 0, %s61
      %s76 = sphi 0, %s62
      %s80 = sphi 0, %s80
      %s82 = sphi 0, %s80
      %s83 = sphi 0, %s82
      %s97 = sphi 0, %s83
      %s101 = sphi 0, %s101
      %s103 = sphi 0, %s101
      %s104 = sphi 0, %s103
      %s118 = sphi 0, %s104
      %s122 = sphi 0, %s122
      %s124 = sphi 0, %s122
      %s125 = sphi 0, %s124
      %s139 = sphi 0, %s125
      %s143 = sphi 0, %s143
      %s145 = sphi 0, %s143
      %s146 = sphi 0, %s145
      %s160 = sphi 0, %s146
      %s164 = sphi 0, %s164
      %s166 = sphi 0, %s164
      %s167 = sphi 0, %s166
      %s181 = sphi 0, %s167
      %s185 = sphi 0, %s185
      %s187 = sphi 0, %s185
      %s188 = sphi 0, %s187
      %s202 = sphi 0, %s188
      %s206 = sphi 0, %s206
      %s208 = sphi 0, %s206
      %s209 = sphi 0, %s208
      %s223 = sphi 0, %s209
      %s227 = sphi 0, %s227
      %s229 = sphi 0, %s227
      %s230 = sphi 0, %s229
      %s244 = sphi 0, %s230
      %s248 = sphi 0, %s248
      %s250 = sphi 0, %s248
      %s251 = sphi 0, %s250
      %s265 = sphi 0, %s251
      %s269 = sphi 0, %s269
      %s271 = sphi 0, %s269
      %s272 = sphi 0, %s271
      %s286 = sphi 0, %s272
      %s290 = sphi 0, %s290
      %s292 = sphi 0, %s290
      %s293 = sphi 0, %s292
      %s307 = sphi 0, %s293
      %s313 = sphi 0, %s315
      %s316 = sphi 0, %s313
      %s317 = sphi 0, %s316
      %s333 = sphi 0, %s317
    $region4: #{tpu_custom_call.1} parent=1 // loop_header_branch
      %28 = sbr.rel (%p26) target = $region8
    $region5: #{tpu_custom_call.1} parent=1 // loop_body
      %s30 = ssub.s32 %s25, 1
      %s31 = ssub.s32 %s25, 2
      %s32 = sadd.s32 %s25, 1
      %s33 = ssub.s32 %s25, %s32
      %p34 = scmp.eq.s32.totalorder %s33, 0
      %s36 = sadd.s32 %s35, 1
      %s37 = scalar_select %p34, %s35, %s36
      %p40 = pneg %p34
      %p41 = scmp.eq.s32.totalorder %s25, 1
      %p42 = por %p40, %p41
      %p43 = scmp.ne.s32.totalorder %s35, %s38
      %p44 = scmp.eq.s32.totalorder %s25, 0
      %p45 = por %p43, %p44
      %p46 = scmp.ne.s32.totalorder %s35, %s38
      %p47 = scmp.eq.s32.totalorder %s30, 1
      %p48 = por %p46, %p47
      %p49 = scmp.ne.s32.totalorder %s38, %s39
      %p50 = scmp.eq.s32.totalorder %s30, 0
      %p51 = por %p49, %p50
      %p52 = scmp.ne.s32.totalorder %s38, %s39
      %p53 = scmp.eq.s32.totalorder %s31, 1
      %p54 = por %p52, %p53
      %p56 = scmp.ne.s32.totalorder %s39, %s55
      %p57 = scmp.eq.s32.totalorder %s31, 0
      %p58 = por %p56, %p57
      %s60 = sadd.s32 %s59, 1
      %p63 = scmp.eq.s32.totalorder %s25, 1
      %p64 = scmp.ne.s32.totalorder %s59, %s61
      %p65 = scmp.eq.s32.totalorder %s25, 0
      %p66 = por %p64, %p65
      %p67 = scmp.ne.s32.totalorder %s59, %s61
      %p68 = scmp.eq.s32.totalorder %s30, 1
      %p69 = por %p67, %p68
      %p70 = scmp.ne.s32.totalorder %s61, %s62
      %p71 = scmp.eq.s32.totalorder %s30, 0
      %p72 = por %p70, %p71
      %p73 = scmp.ne.s32.totalorder %s61, %s62
      %p74 = scmp.eq.s32.totalorder %s31, 1
      %p75 = por %p73, %p74
      %p77 = scmp.ne.s32.totalorder %s62, %s76
      %p78 = scmp.eq.s32.totalorder %s31, 0
      %p79 = por %p77, %p78
      %s81 = sadd.s32 %s80, 1
      %p84 = scmp.eq.s32.totalorder %s25, 1
      %p85 = scmp.ne.s32.totalorder %s80, %s82
      %p86 = scmp.eq.s32.totalorder %s25, 0
      %p87 = por %p85, %p86
      %p88 = scmp.ne.s32.totalorder %s80, %s82
      %p89 = scmp.eq.s32.totalorder %s30, 1
      %p90 = por %p88, %p89
      %p91 = scmp.ne.s32.totalorder %s82, %s83
      %p92 = scmp.eq.s32.totalorder %s30, 0
      %p93 = por %p91, %p92
      %p94 = scmp.ne.s32.totalorder %s82, %s83
      %p95 = scmp.eq.s32.totalorder %s31, 1
      %p96 = por %p94, %p95
      %p98 = scmp.ne.s32.totalorder %s83, %s97
      %p99 = scmp.eq.s32.totalorder %s31, 0
      %p100 = por %p98, %p99
      %s102 = sadd.s32 %s101, 1
      %p105 = scmp.eq.s32.totalorder %s25, 1
      %p106 = scmp.ne.s32.totalorder %s101, %s103
      %p107 = scmp.eq.s32.totalorder %s25, 0
      %p108 = por %p106, %p107
      %p109 = scmp.ne.s32.totalorder %s101, %s103
      %p110 = scmp.eq.s32.totalorder %s30, 1
      %p111 = por %p109, %p110
      %p112 = scmp.ne.s32.totalorder %s103, %s104
      %p113 = scmp.eq.s32.totalorder %s30, 0
      %p114 = por %p112, %p113
      %p115 = scmp.ne.s32.totalorder %s103, %s104
      %p116 = scmp.eq.s32.totalorder %s31, 1
      %p117 = por %p115, %p116
      %p119 = scmp.ne.s32.totalorder %s104, %s118
      %p120 = scmp.eq.s32.totalorder %s31, 0
      %p121 = por %p119, %p120
      %s123 = sadd.s32 %s122, 1
      %p126 = scmp.eq.s32.totalorder %s25, 1
      %p127 = scmp.ne.s32.totalorder %s122, %s124
      %p128 = scmp.eq.s32.totalorder %s25, 0
      %p129 = por %p127, %p128
      %p130 = scmp.ne.s32.totalorder %s122, %s124
      %p131 = scmp.eq.s32.totalorder %s30, 1
      %p132 = por %p130, %p131
      %p133 = scmp.ne.s32.totalorder %s124, %s125
      %p134 = scmp.eq.s32.totalorder %s30, 0
      %p135 = por %p133, %p134
      %p136 = scmp.ne.s32.totalorder %s124, %s125
      %p137 = scmp.eq.s32.totalorder %s31, 1
      %p138 = por %p136, %p137
      %p140 = scmp.ne.s32.totalorder %s125, %s139
      %p141 = scmp.eq.s32.totalorder %s31, 0
      %p142 = por %p140, %p141
      %s144 = sadd.s32 %s143, 1
      %p147 = scmp.eq.s32.totalorder %s25, 1
      %p148 = scmp.ne.s32.totalorder %s143, %s145
      %p149 = scmp.eq.s32.totalorder %s25, 0
      %p150 = por %p148, %p149
      %p151 = scmp.ne.s32.totalorder %s143, %s145
      %p152 = scmp.eq.s32.totalorder %s30, 1
      %p153 = por %p151, %p152
      %p154 = scmp.ne.s32.totalorder %s145, %s146
      %p155 = scmp.eq.s32.totalorder %s30, 0
      %p156 = por %p154, %p155
      %p157 = scmp.ne.s32.totalorder %s145, %s146
      %p158 = scmp.eq.s32.totalorder %s31, 1
      %p159 = por %p157, %p158
      %p161 = scmp.ne.s32.totalorder %s146, %s160
      %p162 = scmp.eq.s32.totalorder %s31, 0
      %p163 = por %p161, %p162
      %s165 = sadd.s32 %s164, 1
      %p168 = scmp.eq.s32.totalorder %s25, 1
      %p169 = scmp.ne.s32.totalorder %s164, %s166
      %p170 = scmp.eq.s32.totalorder %s25, 0
      %p171 = por %p169, %p170
      %p172 = scmp.ne.s32.totalorder %s164, %s166
      %p173 = scmp.eq.s32.totalorder %s30, 1
      %p174 = por %p172, %p173
      %p175 = scmp.ne.s32.totalorder %s166, %s167
      %p176 = scmp.eq.s32.totalorder %s30, 0
      %p177 = por %p175, %p176
      %p178 = scmp.ne.s32.totalorder %s166, %s167
      %p179 = scmp.eq.s32.totalorder %s31, 1
      %p180 = por %p178, %p179
      %p182 = scmp.ne.s32.totalorder %s167, %s181
      %p183 = scmp.eq.s32.totalorder %s31, 0
      %p184 = por %p182, %p183
      %s186 = sadd.s32 %s185, 1
      %p189 = scmp.eq.s32.totalorder %s25, 1
      %p190 = scmp.ne.s32.totalorder %s185, %s187
      %p191 = scmp.eq.s32.totalorder %s25, 0
      %p192 = por %p190, %p191
      %p193 = scmp.ne.s32.totalorder %s185, %s187
      %p194 = scmp.eq.s32.totalorder %s30, 1
      %p195 = por %p193, %p194
      %p196 = scmp.ne.s32.totalorder %s187, %s188
      %p197 = scmp.eq.s32.totalorder %s30, 0
      %p198 = por %p196, %p197
      %p199 = scmp.ne.s32.totalorder %s187, %s188
      %p200 = scmp.eq.s32.totalorder %s31, 1
      %p201 = por %p199, %p200
      %p203 = scmp.ne.s32.totalorder %s188, %s202
      %p204 = scmp.eq.s32.totalorder %s31, 0
      %p205 = por %p203, %p204
      %s207 = sadd.s32 %s206, 1
      %p210 = scmp.eq.s32.totalorder %s25, 1
      %p211 = scmp.ne.s32.totalorder %s206, %s208
      %p212 = scmp.eq.s32.totalorder %s25, 0
      %p213 = por %p211, %p212
      %p214 = scmp.ne.s32.totalorder %s206, %s208
      %p215 = scmp.eq.s32.totalorder %s30, 1
      %p216 = por %p214, %p215
      %p217 = scmp.ne.s32.totalorder %s208, %s209
      %p218 = scmp.eq.s32.totalorder %s30, 0
      %p219 = por %p217, %p218
      %p220 = scmp.ne.s32.totalorder %s208, %s209
      %p221 = scmp.eq.s32.totalorder %s31, 1
      %p222 = por %p220, %p221
      %p224 = scmp.ne.s32.totalorder %s209, %s223
      %p225 = scmp.eq.s32.totalorder %s31, 0
      %p226 = por %p224, %p225
      %s228 = sadd.s32 %s227, 1
      %p231 = scmp.eq.s32.totalorder %s25, 1
      %p232 = scmp.ne.s32.totalorder %s227, %s229
      %p233 = scmp.eq.s32.totalorder %s25, 0
      %p234 = por %p232, %p233
      %p235 = scmp.ne.s32.totalorder %s227, %s229
      %p236 = scmp.eq.s32.totalorder %s30, 1
      %p237 = por %p235, %p236
      %p238 = scmp.ne.s32.totalorder %s229, %s230
      %p239 = scmp.eq.s32.totalorder %s30, 0
      %p240 = por %p238, %p239
      %p241 = scmp.ne.s32.totalorder %s229, %s230
      %p242 = scmp.eq.s32.totalorder %s31, 1
      %p243 = por %p241, %p242
      %p245 = scmp.ne.s32.totalorder %s230, %s244
      %p246 = scmp.eq.s32.totalorder %s31, 0
      %p247 = por %p245, %p246
      %s249 = sadd.s32 %s248, 1
      %p252 = scmp.eq.s32.totalorder %s25, 1
      %p253 = scmp.ne.s32.totalorder %s248, %s250
      %p254 = scmp.eq.s32.totalorder %s25, 0
      %p255 = por %p253, %p254
      %p256 = scmp.ne.s32.totalorder %s248, %s250
      %p257 = scmp.eq.s32.totalorder %s30, 1
      %p258 = por %p256, %p257
      %p259 = scmp.ne.s32.totalorder %s250, %s251
      %p260 = scmp.eq.s32.totalorder %s30, 0
      %p261 = por %p259, %p260
      %p262 = scmp.ne.s32.totalorder %s250, %s251
      %p263 = scmp.eq.s32.totalorder %s31, 1
      %p264 = por %p262, %p263
      %p266 = scmp.ne.s32.totalorder %s251, %s265
      %p267 = scmp.eq.s32.totalorder %s31, 0
      %p268 = por %p266, %p267
      %s270 = sadd.s32 %s269, 1
      %p273 = scmp.eq.s32.totalorder %s25, 1
      %p274 = scmp.ne.s32.totalorder %s269, %s271
      %p275 = scmp.eq.s32.totalorder %s25, 0
      %p276 = por %p274, %p275
      %p277 = scmp.ne.s32.totalorder %s269, %s271
      %p278 = scmp.eq.s32.totalorder %s30, 1
      %p279 = por %p277, %p278
      %p280 = scmp.ne.s32.totalorder %s271, %s272
      %p281 = scmp.eq.s32.totalorder %s30, 0
      %p282 = por %p280, %p281
      %p283 = scmp.ne.s32.totalorder %s271, %s272
      %p284 = scmp.eq.s32.totalorder %s31, 1
      %p285 = por %p283, %p284
      %p287 = scmp.ne.s32.totalorder %s272, %s286
      %p288 = scmp.eq.s32.totalorder %s31, 0
      %p289 = por %p287, %p288
      %s291 = sadd.s32 %s290, 1
      %p294 = scmp.eq.s32.totalorder %s25, 1
      %p295 = scmp.ne.s32.totalorder %s290, %s292
      %p296 = scmp.eq.s32.totalorder %s25, 0
      %p297 = por %p295, %p296
      %p298 = scmp.ne.s32.totalorder %s290, %s292
      %p299 = scmp.eq.s32.totalorder %s30, 1
      %p300 = por %p298, %p299
      %p301 = scmp.ne.s32.totalorder %s292, %s293
      %p302 = scmp.eq.s32.totalorder %s30, 0
      %p303 = por %p301, %p302
      %p304 = scmp.ne.s32.totalorder %s292, %s293
      %p305 = scmp.eq.s32.totalorder %s31, 1
      %p306 = por %p304, %p305
      %p308 = scmp.ne.s32.totalorder %s293, %s307
      %p309 = scmp.eq.s32.totalorder %s31, 0
      %p310 = por %p308, %p309
      %s311 = ssub.s32 %s25, %s32
      %p312 = scmp.eq.s32.totalorder %s311, 0
      %s314 = sadd.s32 %s313, 1
      %s315 = scalar_select %p312, %s313, %s314
      %p318 = pneg %p312
      %p319 = scmp.eq.s32.totalorder %s25, 1
      %p320 = por %p318, %p319
      %p321 = scmp.ne.s32.totalorder %s313, %s316
      %p322 = scmp.eq.s32.totalorder %s25, 0
      %p323 = por %p321, %p322
      %p324 = scmp.ne.s32.totalorder %s313, %s316
      %p325 = scmp.eq.s32.totalorder %s30, 1
      %p326 = por %p324, %p325
      %p327 = scmp.ne.s32.totalorder %s316, %s317
      %p328 = scmp.eq.s32.totalorder %s30, 0
      %p329 = por %p327, %p328
      %p330 = scmp.ne.s32.totalorder %s316, %s317
      %p331 = scmp.eq.s32.totalorder %s31, 1
      %p332 = por %p330, %p331
      %p334 = scmp.ne.s32.totalorder %s317, %s333
      %p335 = scmp.eq.s32.totalorder %s31, 0
      %p336 = por %p334, %p335
      %p337 = scmp.le.s32.totalorder 1, %s25
      %p338 = scmp.lt.s32.totalorder %s25, 3
      %p339 = pnand %p337, %p338
      %p340 = pneg %p339
      // Predicated region
      $region9: #{tpu_custom_call.1} parent=5 // pred_check
        _
      $region10: #{tpu_custom_call.1} parent=5 // pred_check_branch
        %342 = sbr.rel (%p339) target = $region12
      $region11: #{tpu_custom_call.1} parent=5 // pred_region
        %s343 = ssub.s32 %s25, 1
        // Predicated region
        $region13: #{tpu_custom_call.1} parent=11 // pred_check
          %p344 = pneg %p72
        $region14: #{tpu_custom_call.1} parent=11 // pred_check_branch
          %346 = sbr.rel (%p344) target = $region16
        $region15: #{tpu_custom_call.1} parent=11 // pred_region
          %348 = vsyncadd [#allocation3], 0
          %s350 = sshll.u32 %s1, 4
          %s351 = int_to_ptr.hbm [resolvable:$true] %s350
          %s352 = sshll.u32 [#allocation2], 4
          %s353 = int_to_ptr.vmem [resolvable:$true] %s352
          %355 = dma.hbm_to_vmem [thread:$0]  %s351, 16, %s353, [#allocation3]
        $region16: #{tpu_custom_call.1} parent=11 // pred_fallthru
          _
        // Predicated region
        $region17: #{tpu_custom_call.1} parent=11 // pred_check
          %p356 = pneg %p93
        $region18: #{tpu_custom_call.1} parent=11 // pred_check_branch
          %358 = sbr.rel (%p356) target = $region20
        $region19: #{tpu_custom_call.1} parent=11 // pred_region
          %360 = vsyncadd [#allocation6], 0
          %s362 = sshll.u32 %s2, 4
          %s363 = int_to_ptr.hbm [resolvable:$true] %s362
          %s364 = sshll.u32 [#allocation5], 4
          %s365 = int_to_ptr.vmem [resolvable:$true] %s364
          %367 = dma.hbm_to_vmem [thread:$0]  %s363, 16, %s365, [#allocation6]
        $region20: #{tpu_custom_call.1} parent=11 // pred_fallthru
          _
        // Predicated region
        $region21: #{tpu_custom_call.1} parent=11 // pred_check
          %p368 = pneg %p114
        $region22: #{tpu_custom_call.1} parent=11 // pred_check_branch
          %370 = sbr.rel (%p368) target = $region24
        $region23: #{tpu_custom_call.1} parent=11 // pred_region
          %372 = vsyncadd [#allocation6], 0
          %s374 = sshll.u32 %s3, 4
          %s375 = int_to_ptr.hbm [resolvable:$true] %s374
          %s376 = sshll.u32 [#allocation7], 4
          %s377 = int_to_ptr.vmem [resolvable:$true] %s376
          %379 = dma.hbm_to_vmem [thread:$0]  %s375, 16, %s377, [#allocation6]
        $region24: #{tpu_custom_call.1} parent=11 // pred_fallthru
          _
        // Predicated region
        $region25: #{tpu_custom_call.1} parent=11 // pred_check
          %p380 = pneg %p135
        $region26: #{tpu_custom_call.1} parent=11 // pred_check_branch
          %382 = sbr.rel (%p380) target = $region28
        $region27: #{tpu_custom_call.1} parent=11 // pred_region
          %384 = vsyncadd [#allocation9], 0
          %s386 = sshll.u32 %s4, 4
          %s387 = int_to_ptr.hbm [resolvable:$true] %s386
          %s388 = sshll.u32 [#allocation8], 4
          %s389 = int_to_ptr.vmem [resolvable:$true] %s388
          %391 = dma.hbm_to_vmem [thread:$0]  %s387, 16, %s389, [#allocation9]
        $region28: #{tpu_custom_call.1} parent=11 // pred_fallthru
          _
        // Predicated region
        $region29: #{tpu_custom_call.1} parent=11 // pred_check
          %p392 = pneg %p156
        $region30: #{tpu_custom_call.1} parent=11 // pred_check_branch
          %394 = sbr.rel (%p392) target = $region32
        $region31: #{tpu_custom_call.1} parent=11 // pred_region
          _
        $region32: #{tpu_custom_call.1} parent=11 // pred_fallthru
          _
        // Predicated region
        $region33: #{tpu_custom_call.1} parent=11 // pred_check
          %p395 = pneg %p177
        $region34: #{tpu_custom_call.1} parent=11 // pred_check_branch
          %397 = sbr.rel (%p395) target = $region36
        $region35: #{tpu_custom_call.1} parent=11 // pred_region
          %399 = vsyncadd [#allocation9], 0
          %s401 = sshll.u32 %s6, 4
          %s402 = int_to_ptr.hbm [resolvable:$true] %s401
          %s403 = sshll.u32 [#allocation10], 4
          %s404 = int_to_ptr.vmem [resolvable:$true] %s403
          %406 = dma.hbm_to_vmem [thread:$0]  %s402, 16, %s404, [#allocation9]
        $region36: #{tpu_custom_call.1} parent=11 // pred_fallthru
          _
        // Predicated region
        $region37: #{tpu_custom_call.1} parent=11 // pred_check
          %p407 = pneg %p198
        $region38: #{tpu_custom_call.1} parent=11 // pred_check_branch
          %409 = sbr.rel (%p407) target = $region40
        $region39: #{tpu_custom_call.1} parent=11 // pred_region
          _
        $region40: #{tpu_custom_call.1} parent=11 // pred_fallthru
          _
        // Predicated region
        $region41: #{tpu_custom_call.1} parent=11 // pred_check
          %p410 = pneg %p219
        $region42: #{tpu_custom_call.1} parent=11 // pred_check_branch
          %412 = sbr.rel (%p410) target = $region44
        $region43: #{tpu_custom_call.1} parent=11 // pred_region
          _
        $region44: #{tpu_custom_call.1} parent=11 // pred_fallthru
          _
        // Predicated region
        $region45: #{tpu_custom_call.1} parent=11 // pred_check
          %p413 = pneg %p240
        $region46: #{tpu_custom_call.1} parent=11 // pred_check_branch
          %415 = sbr.rel (%p413) target = $region48
        $region47: #{tpu_custom_call.1} parent=11 // pred_region
          _
        $region48: #{tpu_custom_call.1} parent=11 // pred_fallthru
          _
        // Predicated region
        $region49: #{tpu_custom_call.1} parent=11 // pred_check
          %p416 = pneg %p261
        $region50: #{tpu_custom_call.1} parent=11 // pred_check_branch
          %418 = sbr.rel (%p416) target = $region52
        $region51: #{tpu_custom_call.1} parent=11 // pred_region
          _
        $region52: #{tpu_custom_call.1} parent=11 // pred_fallthru
          _
        // Predicated region
        $region53: #{tpu_custom_call.1} parent=11 // pred_check
          %p419 = pneg %p282
        $region54: #{tpu_custom_call.1} parent=11 // pred_check_branch
          %421 = sbr.rel (%p419) target = $region56
        $region55: #{tpu_custom_call.1} parent=11 // pred_region
          _
        $region56: #{tpu_custom_call.1} parent=11 // pred_fallthru
          _
        // Predicated region
        $region57: #{tpu_custom_call.1} parent=11 // pred_check
          %p422 = pneg %p303
        $region58: #{tpu_custom_call.1} parent=11 // pred_check_branch
          %424 = sbr.rel (%p422) target = $region60
        $region59: #{tpu_custom_call.1} parent=11 // pred_region
          _
        $region60: #{tpu_custom_call.1} parent=11 // pred_fallthru
          _
      $region12: #{tpu_custom_call.1} parent=5 // pred_fallthru
        _
      %p425 = scmp.lt.s32.totalorder %s25, 2
      // Predicated region
      $region61: #{tpu_custom_call.1} parent=5 // pred_check
        %p426 = pneg %p425
      $region62: #{tpu_custom_call.1} parent=5 // pred_check_branch
        %428 = sbr.rel (%p426) target = $region64
      $region63: #{tpu_custom_call.1} parent=5 // pred_region
        // Predicated region
        $region65: #{tpu_custom_call.1} parent=63 // pred_check
          %p429 = pneg %p45
        $region66: #{tpu_custom_call.1} parent=63 // pred_check_branch
          %431 = sbr.rel (%p429) target = $region68
        $region67: #{tpu_custom_call.1} parent=63 // pred_region
          %s432 = smul.u32 2, %s25
          %p433 = scmp.lt.s32.totalorder %s432, 3
          %s434 = scalar_select %p433, %s432, 3
          %s435 = smul.addr %s434, 2
          %s436 = smul.addr %s435, 8
          %s437 = scalar_lea.vmem %s0, %s436
          %s438 = smul.u32 2, %s25
        $region68: #{tpu_custom_call.1} parent=63 // pred_fallthru
          _
      $region64: #{tpu_custom_call.1} parent=5 // pred_fallthru
        _
      %p439 = scmp.le.s32.totalorder 1, %s25
      %p440 = scmp.lt.s32.totalorder %s25, 3
      %p441 = pnand %p439, %p440
      %p442 = pneg %p441
      // Predicated region
      $region69: #{tpu_custom_call.1} parent=5 // pred_check
        _
      $region70: #{tpu_custom_call.1} parent=5 // pred_check_branch
        %444 = sbr.rel (%p441) target = $region72
      $region71: #{tpu_custom_call.1} parent=5 // pred_region
        %s445 = ssub.s32 %s25, 1
        // Predicated region
        $region73: #{tpu_custom_call.1} parent=71 // pred_check
          %p446 = pneg %p72
        $region74: #{tpu_custom_call.1} parent=71 // pred_check_branch
          %448 = sbr.rel (%p446) target = $region76
        $region75: #{tpu_custom_call.1} parent=71 // pred_region
          %450 = dma.done [#allocation3], 16
        $region76: #{tpu_custom_call.1} parent=71 // pred_fallthru
          _
        // Predicated region
        $region77: #{tpu_custom_call.1} parent=71 // pred_check
          %p451 = pneg %p93
        $region78: #{tpu_custom_call.1} parent=71 // pred_check_branch
          %453 = sbr.rel (%p451) target = $region80
        $region79: #{tpu_custom_call.1} parent=71 // pred_region
          %455 = dma.done [#allocation6], 16
        $region80: #{tpu_custom_call.1} parent=71 // pred_fallthru
          _
        // Predicated region
        $region81: #{tpu_custom_call.1} parent=71 // pred_check
          %p456 = pneg %p114
        $region82: #{tpu_custom_call.1} parent=71 // pred_check_branch
          %458 = sbr.rel (%p456) target = $region84
        $region83: #{tpu_custom_call.1} parent=71 // pred_region
          %460 = dma.done [#allocation6], 16
        $region84: #{tpu_custom_call.1} parent=71 // pred_fallthru
          _
        // Predicated region
        $region85: #{tpu_custom_call.1} parent=71 // pred_check
          %p461 = pneg %p135
        $region86: #{tpu_custom_call.1} parent=71 // pred_check_branch
          %463 = sbr.rel (%p461) target = $region88
        $region87: #{tpu_custom_call.1} parent=71 // pred_region
          %465 = dma.done [#allocation9], 16
        $region88: #{tpu_custom_call.1} parent=71 // pred_fallthru
          _
        // Predicated region
        $region89: #{tpu_custom_call.1} parent=71 // pred_check
          %p466 = pneg %p177
        $region90: #{tpu_custom_call.1} parent=71 // pred_check_branch
          %468 = sbr.rel (%p466) target = $region92
        $region91: #{tpu_custom_call.1} parent=71 // pred_region
          %470 = dma.done [#allocation9], 16
        $region92: #{tpu_custom_call.1} parent=71 // pred_fallthru
          _
        %s471 = smul.u32 2, %s30
        %p472 = scmp.lt.s32.totalorder %s471, 3
        %s473 = scalar_select %p472, %s471, 3
        %s474 = smul.addr %s473, 2
        %s475 = smul.addr %s474, 8
        %s476 = scalar_lea.vmem %s0, %s475
        %p477 = pneg %p51
        %p478 = pneg %p48
        %p479 = pneg %p72
        %p480 = pneg %p69
        %p481 = pneg %p93
        %p482 = pneg %p90
        %p483 = pneg %p114
        %p484 = pneg %p111
        %p485 = pneg %p135
        %p486 = pneg %p132
        %p487 = pneg %p156
        %p488 = pneg %p153
        %p489 = pneg %p177
        %p490 = pneg %p174
        %p491 = pneg %p198
        %p492 = pneg %p195
        %p493 = pneg %p219
        %p494 = pneg %p216
        %p495 = pneg %p240
        %p496 = pneg %p237
        %p497 = pneg %p261
        %p498 = pneg %p258
        %p499 = pneg %p282
        %p500 = pneg %p279
        %p501 = pneg %p303
        %p502 = pneg %p300
        %p503 = pneg %p329
        %p504 = pneg %p326
        %s505 = sand.u32 %s316, 1
        %s506 = scalar_lea.sflag [#allocation4], %s505
        %s507 = sand.u32 %s316, 1
        %s508 = smul.addr %s507, 32
        %s509 = scalar_lea.vmem [#allocation11], %s508
        %s510 = smul.u32 2, %s30
        %p511 = scmp.lt.s32.totalorder %s510, 3
        %s512 = scalar_select %p511, %s510, 3
        %s513 = smul.addr %s512, 2
        %s514 = smul.addr %s513, 8
        %s515 = scalar_lea.vmem %s0, %s514
        %s516 = smul.u32 2, %s30
        %s517 = smul.u32 2, %s30
        %v519 = vld [vmem:[%s515] sm:$0xff]
        %v520 = vld [vmem:[%s515 + $0x8] sm:$0xff]
        %v521 = vld [vmem:[%s515 + $0x10] sm:$0xff]
        %v522 = vld [vmem:[%s515 + $0x18] sm:$0xff]
        %v523 = vld [vmem:[#allocation2] sm:$0x1]
        %v524 = vld [vmem:[#allocation5] sm:$0x1]
        %vm525 = vcmask 261120
        %v526 = vsel %vm525, %v519, 0.0
        %527 = vadd.xlane.f32.xlu0 %v526
        %v528 = vpop.xlane.xlu0 %527
        %v529 = vsel %vm525, %v520, 0.0
        %530 = vadd.xlane.f32.xlu0 %v529
        %v531 = vpop.xlane.xlu0 %530
        %v532 = vsel %vm525, %v521, 0.0
        %533 = vadd.xlane.f32.xlu0 %v532
        %v534 = vpop.xlane.xlu0 %533
        %v535 = vsel %vm525, %v522, 0.0
        %536 = vadd.xlane.f32.xlu0 %v535
        %v537 = vpop.xlane.xlu0 %536
        %v538 = vrcp.pop 32.0
        %v539 = vmul.f32 32.0, %v538
        %v540 = vsub.f32 1.0, %v539
        %v541 = vmul.f32 %v538, %v540
        %v542 = vadd.f32 %v538, %v541
        %vm543 = vweird.f32 %v538
        %v544 = vsel %vm543, %v538, %v542
        %v545 = vmul.f32 %v528, %v544
        %v546 = vmul.f32 %v531, %v544
        %v547 = vmul.f32 %v534, %v544
        %v548 = vmul.f32 %v537, %v544
        %v549 = vsub.f32 %v519, %v545
        %v550 = vsub.f32 %v520, %v546
        %v551 = vsub.f32 %v521, %v547
        %v552 = vsub.f32 %v522, %v548
        %v553 = vmul.f32 %v549, %v549
        %v554 = vmul.f32 %v550, %v550
        %v555 = vmul.f32 %v551, %v551
        %v556 = vmul.f32 %v552, %v552
        %v557 = vsel %vm525, %v553, 0.0
        %558 = vadd.xlane.f32.xlu0 %v557
        %v559 = vpop.xlane.xlu0 %558
        %v560 = vsel %vm525, %v554, 0.0
        %561 = vadd.xlane.f32.xlu0 %v560
        %v562 = vpop.xlane.xlu0 %561
        %v563 = vsel %vm525, %v555, 0.0
        %564 = vadd.xlane.f32.xlu0 %v563
        %v565 = vpop.xlane.xlu0 %564
        %v566 = vsel %vm525, %v556, 0.0
        %567 = vadd.xlane.f32.xlu0 %v566
        %v568 = vpop.xlane.xlu0 %567
        %v569 = vmul.f32 %v559, %v544
        %v570 = vmul.f32 %v562, %v544
        %v571 = vmul.f32 %v565, %v544
        %v572 = vmul.f32 %v568, %v544
        %v573 = vadd.f32 %v569, 1e-05
        %v574 = vadd.f32 %v570, 1e-05
        %v575 = vadd.f32 %v571, 1e-05
        %v576 = vadd.f32 %v572, 1e-05
        %v577 = vrsqrt.pop %v573
        %v578 = vmul.f32 %v577, %v573
        %v579 = vmul.f32 %v578, %v577
        %v580 = vmul.f32 0.5, %v579
        %v581 = vsub.f32 1.5, %v580
        %v582 = vmul.f32 %v577, %v581
        %vm583 = vweird.f32 %v573
        %vm584 = vweird.f32 %v577
        %vm585 = vmor %vm583, %vm584
        %v586 = vsel %vm585, %v577, %v582
        %v587 = vrsqrt.pop %v574
        %v588 = vmul.f32 %v587, %v574
        %v589 = vmul.f32 %v588, %v587
        %v590 = vmul.f32 0.5, %v589
        %v591 = vsub.f32 1.5, %v590
        %v592 = vmul.f32 %v587, %v591
        %vm593 = vweird.f32 %v574
        %vm594 = vweird.f32 %v587
        %vm595 = vmor %vm593, %vm594
        %v596 = vsel %vm595, %v587, %v592
        %v597 = vrsqrt.pop %v575
        %v598 = vmul.f32 %v597, %v575
        %v599 = vmul.f32 %v598, %v597
        %v600 = vmul.f32 0.5, %v599
        %v601 = vsub.f32 1.5, %v600
        %v602 = vmul.f32 %v597, %v601
        %vm603 = vweird.f32 %v575
        %vm604 = vweird.f32 %v597
        %vm605 = vmor %vm603, %vm604
        %v606 = vsel %vm605, %v597, %v602
        %v607 = vrsqrt.pop %v576
        %v608 = vmul.f32 %v607, %v576
        %v609 = vmul.f32 %v608, %v607
        %v610 = vmul.f32 0.5, %v609
        %v611 = vsub.f32 1.5, %v610
        %v612 = vmul.f32 %v607, %v611
        %vm613 = vweird.f32 %v576
        %vm614 = vweird.f32 %v607
        %vm615 = vmor %vm613, %vm614
        %v616 = vsel %vm615, %v607, %v612
        %v617 = vmul.f32 %v549, %v586
        %v618 = vmul.f32 %v550, %v596
        %v619 = vmul.f32 %v551, %v606
        %v620 = vmul.f32 %v552, %v616
        %v622 = vperm.slane %v523, 0
        %v624 = vmul.f32 %v617, %v622
        %v625 = vmul.f32 %v618, %v622
        %v626 = vmul.f32 %v619, %v622
        %v627 = vmul.f32 %v620, %v622
        %v629 = vperm.slane %v524, 0
        %v631 = vadd.f32 %v624, %v629
        %v632 = vadd.f32 %v625, %v629
        %v633 = vadd.f32 %v626, %v629
        %v634 = vadd.f32 %v627, %v629
        %v635 = vpack.c.bf16 %v631, %v631
        %v636 = vpack.c.bf16 %v632, %v632
        %v637 = vpack.c.bf16 %v633, %v633
        %v638 = vpack.c.bf16 %v634, %v634
        %v639 = vld [vmem:[%s5] sm:$0xf]
        %v640 = vld [vmem:[%s5 + $0x4] sm:$0xf]
        %v641 = vld [vmem:[%s7] sm:$0xf]
        %v642 = vld [vmem:[%s7 + $0x4] sm:$0xf]
        %v643 = vld [vmem:[#allocation10] sm:$0x1]
        %v644 = vld [vmem:[%s8] sm:$0xff]
        %v645 = vld [vmem:[%s8 + $0x8] sm:$0xff]
        %v647 = vperm.slane %v643, 0
        %v651 = vunpack.c.l.b16 %v635
        %v652 = vunpack.c.l.b16 %v636
        %v653 = vpack.c.b16 %v652, %v651
        %655 = vxpose.xlu0.c.b16.start [1/8] %v653, 128
        %656 = vxpose.xlu0.c.b16.cont [2/8] 0, 128
        %657 = vxpose.xlu0.c.b16.cont [3/8] 0, 128
        %658 = vxpose.xlu0.c.b16.cont [4/8] 0, 128
        %659 = vxpose.xlu0.c.b16.cont [5/8] 0, 128
        %660 = vxpose.xlu0.c.b16.cont [6/8] 0, 128
        %661 = vxpose.xlu0.c.b16.cont [7/8] 0, 128
        %662 = vxpose.xlu0.c.b16.end [8/8] 0, 128
        %v663 = vpop.trf.xlu0
        %v664 = vpop.trf.xlu0
        %v665 = vpop.trf.xlu0
        %v666 = vpop.trf.xlu0
        %v667 = vpop.trf.xlu0
        %v668 = vpop.trf.xlu0
        %v669 = vpop.trf.xlu0
        %v670 = vpop.trf.xlu0
        %v673 = vunpack.c.l.b16 %v639
        %v674 = vunpack.c.l.b16 %v640
        %v675 = vpack.c.b16 %v674, %v673
        %vm677 = vcmask 130048
        %v679 = vsel %vm677, %v663, 0
        %v682 = vsel %vm677, %v664, 0
        %684 = vmatpush.bf16.msra.mxu0 0
        %685 = vmatpush.bf16.msra.mxu0 0
        %686 = vmatpush.bf16.msra.mxu0 0
        %687 = vmatpush.bf16.msra.mxu0 0
        %688 = vmatpush.bf16.msra.mxu0 0
        %689 = vmatpush.bf16.msra.mxu0 0
        %690 = vmatpush.bf16.msra.mxu0 0
        %691 = vmatpush.bf16.msra.mxu0 %v675
        %692 = vmatmul.bf16.gmra.mxu0 %v679
        %v693 = vpop.f32.mrf.mxu0
        %v694 = vadd.f32 %v647, %v693
        %v695 = vpop.f32.mrf.mxu0
        %v696 = vadd.f32 %v647, %v695
        %697 = vmatmul.bf16.gmra.mxu0 %v682
        %v698 = vpop.f32.mrf.mxu0
        %v699 = vadd.f32 %v647, %v698
        %v700 = vpop.f32.mrf.mxu0
        %v701 = vadd.f32 %v647, %v700
        %702 = vdwg.mxu0
        %v703 = vmul.f32 %v694, 0.5
        %v704 = vmul.f32 %v696, 0.5
        %v705 = vmul.f32 %v699, 0.5
        %v706 = vmul.f32 %v701, 0.5
        %v707 = vmul.f32 %v694, 0.70710677
        %v708 = vmul.f32 %v696, 0.70710677
        %v709 = vmul.f32 %v699, 0.70710677
        %v710 = vmul.f32 %v701, 0.70710677
        %v711 = vmul.f32 %v707, %v707
        %v712 = vmin.f32 16.0, %v711
        %v713 = vmul.f32 %v712, 2.1237322e-06
        %v714 = vadd.f32 %v713, 0.00028619796
        %v715 = vmul.f32 %v712, %v714
        %v716 = vadd.f32 %v715, 0.0036580483
        %v717 = vmul.f32 %v712, %v716
        %v718 = vadd.f32 %v717, 0.05243302
        %v719 = vmul.f32 %v712, %v718
        %v720 = vadd.f32 %v719, 0.18741608
        %v721 = vmul.f32 %v712, %v720
        %v722 = vadd.f32 %v721, 1.1283791
        %v723 = vmul.f32 %v707, %v722
        %v724 = vmul.f32 %v712, 3.8918573e-05
        %v725 = vadd.f32 %v724, 0.001143296
        %v726 = vmul.f32 %v712, %v725
        %v727 = vadd.f32 %v726, 0.014752088
        %v728 = vmul.f32 %v712, %v727
        %v729 = vadd.f32 %v728, 0.112945676
        %v730 = vmul.f32 %v712, %v729
        %v731 = vadd.f32 %v730, 0.4994258
        %v732 = vmul.f32 %v712, %v731
        %v733 = vadd.f32 %v732, 1.0
        %v734 = vrcp.pop %v733
        %v735 = vmul.f32 %v733, %v734
        %v736 = vsub.f32 1.0, %v735
        %v737 = vmul.f32 %v734, %v736
        %v738 = vadd.f32 %v734, %v737
        %vm739 = vweird.f32 %v733
        %vm740 = vweird.f32 %v734
        %vm741 = vmor %vm739, %vm740
        %v742 = vsel %vm741, %v734, %v738
        %v743 = vand.u32 2147483647, %v733
        %vm744 = vcmp.eq.f32.partialorder %v743, 8.507059e+37
        %v745 = vand.u32 %v733, 2147483648
        %v746 = vor.u32 1.1754944e-38, %v745
        %v747 = vsel %vm744, %v746, %v742
        %v748 = vmul.f32 %v723, %v747
        %v749 = vmin.f32 %v748, 1.0
        %v750 = vmax.f32 %v749, -1.0
        %v751 = vmul.f32 %v708, %v708
        %v752 = vmin.f32 16.0, %v751
        %v753 = vmul.f32 %v752, 2.1237322e-06
        %v754 = vadd.f32 %v753, 0.00028619796
        %v755 = vmul.f32 %v752, %v754
        %v756 = vadd.f32 %v755, 0.0036580483
        %v757 = vmul.f32 %v752, %v756
        %v758 = vadd.f32 %v757, 0.05243302
        %v759 = vmul.f32 %v752, %v758
        %v760 = vadd.f32 %v759, 0.18741608
        %v761 = vmul.f32 %v752, %v760
        %v762 = vadd.f32 %v761, 1.1283791
        %v763 = vmul.f32 %v708, %v762
        %v764 = vmul.f32 %v752, 3.8918573e-05
        %v765 = vadd.f32 %v764, 0.001143296
        %v766 = vmul.f32 %v752, %v765
        %v767 = vadd.f32 %v766, 0.014752088
        %v768 = vmul.f32 %v752, %v767
        %v769 = vadd.f32 %v768, 0.112945676
        %v770 = vmul.f32 %v752, %v769
        %v771 = vadd.f32 %v770, 0.4994258
        %v772 = vmul.f32 %v752, %v771
        %v773 = vadd.f32 %v772, 1.0
        %v774 = vrcp.pop %v773
        %v775 = vmul.f32 %v773, %v774
        %v776 = vsub.f32 1.0, %v775
        %v777 = vmul.f32 %v774, %v776
        %v778 = vadd.f32 %v774, %v777
        %vm779 = vweird.f32 %v773
        %vm780 = vweird.f32 %v774
        %vm781 = vmor %vm779, %vm780
        %v782 = vsel %vm781, %v774, %v778
        %v783 = vand.u32 2147483647, %v773
        %vm784 = vcmp.eq.f32.partialorder %v783, 8.507059e+37
        %v785 = vand.u32 %v773, 2147483648
        %v786 = vor.u32 1.1754944e-38, %v785
        %v787 = vsel %vm784, %v786, %v782
        %v788 = vmul.f32 %v763, %v787
        %v789 = vmin.f32 %v788, 1.0
        %v790 = vmax.f32 %v789, -1.0
        %v791 = vmul.f32 %v709, %v709
        %v792 = vmin.f32 16.0, %v791
        %v793 = vmul.f32 %v792, 2.1237322e-06
        %v794 = vadd.f32 %v793, 0.00028619796
        %v795 = vmul.f32 %v792, %v794
        %v796 = vadd.f32 %v795, 0.0036580483
        %v797 = vmul.f32 %v792, %v796
        %v798 = vadd.f32 %v797, 0.05243302
        %v799 = vmul.f32 %v792, %v798
        %v800 = vadd.f32 %v799, 0.18741608
        %v801 = vmul.f32 %v792, %v800
        %v802 = vadd.f32 %v801, 1.1283791
        %v803 = vmul.f32 %v709, %v802
        %v804 = vmul.f32 %v792, 3.8918573e-05
        %v805 = vadd.f32 %v804, 0.001143296
        %v806 = vmul.f32 %v792, %v805
        %v807 = vadd.f32 %v806, 0.014752088
        %v808 = vmul.f32 %v792, %v807
        %v809 = vadd.f32 %v808, 0.112945676
        %v810 = vmul.f32 %v792, %v809
        %v811 = vadd.f32 %v810, 0.4994258
        %v812 = vmul.f32 %v792, %v811
        %v813 = vadd.f32 %v812, 1.0
        %v814 = vrcp.pop %v813
        %v815 = vmul.f32 %v813, %v814
        %v816 = vsub.f32 1.0, %v815
        %v817 = vmul.f32 %v814, %v816
        %v818 = vadd.f32 %v814, %v817
        %vm819 = vweird.f32 %v813
        %vm820 = vweird.f32 %v814
        %vm821 = vmor %vm819, %vm820
        %v822 = vsel %vm821, %v814, %v818
        %v823 = vand.u32 2147483647, %v813
        %vm824 = vcmp.eq.f32.partialorder %v823, 8.507059e+37
        %v825 = vand.u32 %v813, 2147483648
        %v826 = vor.u32 1.1754944e-38, %v825
        %v827 = vsel %vm824, %v826, %v822
        %v828 = vmul.f32 %v803, %v827
        %v829 = vmin.f32 %v828, 1.0
        %v830 = vmax.f32 %v829, -1.0
        %v831 = vmul.f32 %v710, %v710
        %v832 = vmin.f32 16.0, %v831
        %v833 = vmul.f32 %v832, 2.1237322e-06
        %v834 = vadd.f32 %v833, 0.00028619796
        %v835 = vmul.f32 %v832, %v834
        %v836 = vadd.f32 %v835, 0.0036580483
        %v837 = vmul.f32 %v832, %v836
        %v838 = vadd.f32 %v837, 0.05243302
        %v839 = vmul.f32 %v832, %v838
        %v840 = vadd.f32 %v839, 0.18741608
        %v841 = vmul.f32 %v832, %v840
        %v842 = vadd.f32 %v841, 1.1283791
        %v843 = vmul.f32 %v710, %v842
        %v844 = vmul.f32 %v832, 3.8918573e-05
        %v845 = vadd.f32 %v844, 0.001143296
        %v846 = vmul.f32 %v832, %v845
        %v847 = vadd.f32 %v846, 0.014752088
        %v848 = vmul.f32 %v832, %v847
        %v849 = vadd.f32 %v848, 0.112945676
        %v850 = vmul.f32 %v832, %v849
        %v851 = vadd.f32 %v850, 0.4994258
        %v852 = vmul.f32 %v832, %v851
        %v853 = vadd.f32 %v852, 1.0
        %v854 = vrcp.pop %v853
        %v855 = vmul.f32 %v853, %v854
        %v856 = vsub.f32 1.0, %v855
        %v857 = vmul.f32 %v854, %v856
        %v858 = vadd.f32 %v854, %v857
        %vm859 = vweird.f32 %v853
        %vm860 = vweird.f32 %v854
        %vm861 = vmor %vm859, %vm860
        %v862 = vsel %vm861, %v854, %v858
        %v863 = vand.u32 2147483647, %v853
        %vm864 = vcmp.eq.f32.partialorder %v863, 8.507059e+37
        %v865 = vand.u32 %v853, 2147483648
        %v866 = vor.u32 1.1754944e-38, %v865
        %v867 = vsel %vm864, %v866, %v862
        %v868 = vmul.f32 %v843, %v867
        %v869 = vmin.f32 %v868, 1.0
        %v870 = vmax.f32 %v869, -1.0
        %v871 = vadd.f32 %v750, 1.0
        %v872 = vadd.f32 %v790, 1.0
        %v873 = vadd.f32 %v830, 1.0
        %v874 = vadd.f32 %v870, 1.0
        %v875 = vmul.f32 %v703, %v871
        %v876 = vmul.f32 %v704, %v872
        %v877 = vmul.f32 %v705, %v873
        %v878 = vmul.f32 %v706, %v874
        %v879 = vpack.c.bf16 %v876, %v875
        %v880 = vpack.c.bf16 %v878, %v877
        %882 = vset.pattern.permute.xlu0 0
        %883 = vperm.xlu0 %882, %v644
        %v884 = vpop.permute.xlu0 %883
        %887 = vset.pattern.permute.xlu0 0
        %888 = vperm.xlu0 %887, %v645
        %v889 = vpop.permute.xlu0 %888
        %v893 = vunpack.c.l.b16 %v641
        %v894 = vunpack.c.l.b16 %v642
        %v895 = vpack.c.b16 %v894, %v893
        %vm896 = vcmask 64512
        %v898 = vsel %vm896, %v895, 0
        %v901 = vsel %vm896, %v879, 0
        %v904 = vsel %vm896, %v880, 0
        %906 = vmatpush.bf16.xpose.msra.mxu0 0
        %907 = vmatpush.bf16.xpose.msra.mxu0 0
        %908 = vmatpush.bf16.xpose.msra.mxu0 0
        %909 = vmatpush.bf16.xpose.msra.mxu0 0
        %910 = vmatpush.bf16.xpose.msra.mxu0 0
        %911 = vmatpush.bf16.xpose.msra.mxu0 0
        %912 = vmatpush.bf16.xpose.msra.mxu0 %v904
        %913 = vmatpush.bf16.xpose.msra.mxu0 %v901
        %914 = vmatmul.bf16.gmra.mxu0 %v898
        %v915 = vpop.f32.mrf.mxu0
        %v916 = vadd.f32 %v884, %v915
        %v917 = vpop.f32.mrf.mxu0
        %v918 = vadd.f32 %v889, %v917
        %919 = vdwg.mxu0
        %v922 = vunpack.c.l.b16 %v637
        %v923 = vunpack.c.l.b16 %v638
        %v924 = vpack.c.b16 %v923, %v922
        %926 = vxpose.xlu0.c.b16.start [1/8] %v924, 128
        %927 = vxpose.xlu0.c.b16.cont [2/8] 0, 128
        %928 = vxpose.xlu0.c.b16.cont [3/8] 0, 128
        %929 = vxpose.xlu0.c.b16.cont [4/8] 0, 128
        %930 = vxpose.xlu0.c.b16.cont [5/8] 0, 128
        %931 = vxpose.xlu0.c.b16.cont [6/8] 0, 128
        %932 = vxpose.xlu0.c.b16.cont [7/8] 0, 128
        %933 = vxpose.xlu0.c.b16.end [8/8] 0, 128
        %v934 = vpop.trf.xlu0
        %v935 = vpop.trf.xlu0
        %v936 = vpop.trf.xlu0
        %v937 = vpop.trf.xlu0
        %v938 = vpop.trf.xlu0
        %v939 = vpop.trf.xlu0
        %v940 = vpop.trf.xlu0
        %v941 = vpop.trf.xlu0
        %v943 = vsel %vm677, %v934, 0
        %v946 = vsel %vm677, %v935, 0
        %948 = vmatpush.bf16.msra.mxu0 0
        %949 = vmatpush.bf16.msra.mxu0 0
        %950 = vmatpush.bf16.msra.mxu0 0
        %951 = vmatpush.bf16.msra.mxu0 0
        %952 = vmatpush.bf16.msra.mxu0 0
        %953 = vmatpush.bf16.msra.mxu0 0
        %954 = vmatpush.bf16.msra.mxu0 0
        %955 = vmatpush.bf16.msra.mxu0 %v675
        %956 = vmatmul.bf16.gmra.mxu0 %v943
        %v957 = vpop.f32.mrf.mxu0
        %v958 = vadd.f32 %v647, %v957
        %v959 = vpop.f32.mrf.mxu0
        %v960 = vadd.f32 %v647, %v959
        %961 = vmatmul.bf16.gmra.mxu0 %v946
        %v962 = vpop.f32.mrf.mxu0
        %v963 = vadd.f32 %v647, %v962
        %v964 = vpop.f32.mrf.mxu0
        %v965 = vadd.f32 %v647, %v964
        %966 = vdwg.mxu0
        %v967 = vmul.f32 %v958, 0.5
        %v968 = vmul.f32 %v960, 0.5
        %v969 = vmul.f32 %v963, 0.5
        %v970 = vmul.f32 %v965, 0.5
        %v971 = vmul.f32 %v958, 0.70710677
        %v972 = vmul.f32 %v960, 0.70710677
        %v973 = vmul.f32 %v963, 0.70710677
        %v974 = vmul.f32 %v965, 0.70710677
        %v975 = vmul.f32 %v971, %v971
        %v976 = vmin.f32 16.0, %v975
        %v977 = vmul.f32 %v976, 2.1237322e-06
        %v978 = vadd.f32 %v977, 0.00028619796
        %v979 = vmul.f32 %v976, %v978
        %v980 = vadd.f32 %v979, 0.0036580483
        %v981 = vmul.f32 %v976, %v980
        %v982 = vadd.f32 %v981, 0.05243302
        %v983 = vmul.f32 %v976, %v982
        %v984 = vadd.f32 %v983, 0.18741608
        %v985 = vmul.f32 %v976, %v984
        %v986 = vadd.f32 %v985, 1.1283791
        %v987 = vmul.f32 %v971, %v986
        %v988 = vmul.f32 %v976, 3.8918573e-05
        %v989 = vadd.f32 %v988, 0.001143296
        %v990 = vmul.f32 %v976, %v989
        %v991 = vadd.f32 %v990, 0.014752088
        %v992 = vmul.f32 %v976, %v991
        %v993 = vadd.f32 %v992, 0.112945676
        %v994 = vmul.f32 %v976, %v993
        %v995 = vadd.f32 %v994, 0.4994258
        %v996 = vmul.f32 %v976, %v995
        %v997 = vadd.f32 %v996, 1.0
        %v998 = vrcp.pop %v997
        %v999 = vmul.f32 %v997, %v998
        %v1000 = vsub.f32 1.0, %v999
        %v1001 = vmul.f32 %v998, %v1000
        %v1002 = vadd.f32 %v998, %v1001
        %vm1003 = vweird.f32 %v997
        %vm1004 = vweird.f32 %v998
        %vm1005 = vmor %vm1003, %vm1004
        %v1006 = vsel %vm1005, %v998, %v1002
        %v1007 = vand.u32 2147483647, %v997
        %vm1008 = vcmp.eq.f32.partialorder %v1007, 8.507059e+37
        %v1009 = vand.u32 %v997, 2147483648
        %v1010 = vor.u32 1.1754944e-38, %v1009
        %v1011 = vsel %vm1008, %v1010, %v1006
        %v1012 = vmul.f32 %v987, %v1011
        %v1013 = vmin.f32 %v1012, 1.0
        %v1014 = vmax.f32 %v1013, -1.0
        %v1015 = vmul.f32 %v972, %v972
        %v1016 = vmin.f32 16.0, %v1015
        %v1017 = vmul.f32 %v1016, 2.1237322e-06
        %v1018 = vadd.f32 %v1017, 0.00028619796
        %v1019 = vmul.f32 %v1016, %v1018
        %v1020 = vadd.f32 %v1019, 0.0036580483
        %v1021 = vmul.f32 %v1016, %v1020
        %v1022 = vadd.f32 %v1021, 0.05243302
        %v1023 = vmul.f32 %v1016, %v1022
        %v1024 = vadd.f32 %v1023, 0.18741608
        %v1025 = vmul.f32 %v1016, %v1024
        %v1026 = vadd.f32 %v1025, 1.1283791
        %v1027 = vmul.f32 %v972, %v1026
        %v1028 = vmul.f32 %v1016, 3.8918573e-05
        %v1029 = vadd.f32 %v1028, 0.001143296
        %v1030 = vmul.f32 %v1016, %v1029
        %v1031 = vadd.f32 %v1030, 0.014752088
        %v1032 = vmul.f32 %v1016, %v1031
        %v1033 = vadd.f32 %v1032, 0.112945676
        %v1034 = vmul.f32 %v1016, %v1033
        %v1035 = vadd.f32 %v1034, 0.4994258
        %v1036 = vmul.f32 %v1016, %v1035
        %v1037 = vadd.f32 %v1036, 1.0
        %v1038 = vrcp.pop %v1037
        %v1039 = vmul.f32 %v1037, %v1038
        %v1040 = vsub.f32 1.0, %v1039
        %v1041 = vmul.f32 %v1038, %v1040
        %v1042 = vadd.f32 %v1038, %v1041
        %vm1043 = vweird.f32 %v1037
        %vm1044 = vweird.f32 %v1038
        %vm1045 = vmor %vm1043, %vm1044
        %v1046 = vsel %vm1045, %v1038, %v1042
        %v1047 = vand.u32 2147483647, %v1037
        %vm1048 = vcmp.eq.f32.partialorder %v1047, 8.507059e+37
        %v1049 = vand.u32 %v1037, 2147483648
        %v1050 = vor.u32 1.1754944e-38, %v1049
        %v1051 = vsel %vm1048, %v1050, %v1046
        %v1052 = vmul.f32 %v1027, %v1051
        %v1053 = vmin.f32 %v1052, 1.0
        %v1054 = vmax.f32 %v1053, -1.0
        %v1055 = vmul.f32 %v973, %v973
        %v1056 = vmin.f32 16.0, %v1055
        %v1057 = vmul.f32 %v1056, 2.1237322e-06
        %v1058 = vadd.f32 %v1057, 0.00028619796
        %v1059 = vmul.f32 %v1056, %v1058
        %v1060 = vadd.f32 %v1059, 0.0036580483
        %v1061 = vmul.f32 %v1056, %v1060
        %v1062 = vadd.f32 %v1061, 0.05243302
        %v1063 = vmul.f32 %v1056, %v1062
        %v1064 = vadd.f32 %v1063, 0.18741608
        %v1065 = vmul.f32 %v1056, %v1064
        %v1066 = vadd.f32 %v1065, 1.1283791
        %v1067 = vmul.f32 %v973, %v1066
        %v1068 = vmul.f32 %v1056, 3.8918573e-05
        %v1069 = vadd.f32 %v1068, 0.001143296
        %v1070 = vmul.f32 %v1056, %v1069
        %v1071 = vadd.f32 %v1070, 0.014752088
        %v1072 = vmul.f32 %v1056, %v1071
        %v1073 = vadd.f32 %v1072, 0.112945676
        %v1074 = vmul.f32 %v1056, %v1073
        %v1075 = vadd.f32 %v1074, 0.4994258
        %v1076 = vmul.f32 %v1056, %v1075
        %v1077 = vadd.f32 %v1076, 1.0
        %v1078 = vrcp.pop %v1077
        %v1079 = vmul.f32 %v1077, %v1078
        %v1080 = vsub.f32 1.0, %v1079
        %v1081 = vmul.f32 %v1078, %v1080
        %v1082 = vadd.f32 %v1078, %v1081
        %vm1083 = vweird.f32 %v1077
        %vm1084 = vweird.f32 %v1078
        %vm1085 = vmor %vm1083, %vm1084
        %v1086 = vsel %vm1085, %v1078, %v1082
        %v1087 = vand.u32 2147483647, %v1077
        %vm1088 = vcmp.eq.f32.partialorder %v1087, 8.507059e+37
        %v1089 = vand.u32 %v1077, 2147483648
        %v1090 = vor.u32 1.1754944e-38, %v1089
        %v1091 = vsel %vm1088, %v1090, %v1086
        %v1092 = vmul.f32 %v1067, %v1091
        %v1093 = vmin.f32 %v1092, 1.0
        %v1094 = vmax.f32 %v1093, -1.0
        %v1095 = vmul.f32 %v974, %v974
        %v1096 = vmin.f32 16.0, %v1095
        %v1097 = vmul.f32 %v1096, 2.1237322e-06
        %v1098 = vadd.f32 %v1097, 0.00028619796
        %v1099 = vmul.f32 %v1096, %v1098
        %v1100 = vadd.f32 %v1099, 0.0036580483
        %v1101 = vmul.f32 %v1096, %v1100
        %v1102 = vadd.f32 %v1101, 0.05243302
        %v1103 = vmul.f32 %v1096, %v1102
        %v1104 = vadd.f32 %v1103, 0.18741608
        %v1105 = vmul.f32 %v1096, %v1104
        %v1106 = vadd.f32 %v1105, 1.1283791
        %v1107 = vmul.f32 %v974, %v1106
        %v1108 = vmul.f32 %v1096, 3.8918573e-05
        %v1109 = vadd.f32 %v1108, 0.001143296
        %v1110 = vmul.f32 %v1096, %v1109
        %v1111 = vadd.f32 %v1110, 0.014752088
        %v1112 = vmul.f32 %v1096, %v1111
        %v1113 = vadd.f32 %v1112, 0.112945676
        %v1114 = vmul.f32 %v1096, %v1113
        %v1115 = vadd.f32 %v1114, 0.4994258
        %v1116 = vmul.f32 %v1096, %v1115
        %v1117 = vadd.f32 %v1116, 1.0
        %v1118 = vrcp.pop %v1117
        %v1119 = vmul.f32 %v1117, %v1118
        %v1120 = vsub.f32 1.0, %v1119
        %v1121 = vmul.f32 %v1118, %v1120
        %v1122 = vadd.f32 %v1118, %v1121
        %vm1123 = vweird.f32 %v1117
        %vm1124 = vweird.f32 %v1118
        %vm1125 = vmor %vm1123, %vm1124
        %v1126 = vsel %vm1125, %v1118, %v1122
        %v1127 = vand.u32 2147483647, %v1117
        %vm1128 = vcmp.eq.f32.partialorder %v1127, 8.507059e+37
        %v1129 = vand.u32 %v1117, 2147483648
        %v1130 = vor.u32 1.1754944e-38, %v1129
        %v1131 = vsel %vm1128, %v1130, %v1126
        %v1132 = vmul.f32 %v1107, %v1131
        %v1133 = vmin.f32 %v1132, 1.0
        %v1134 = vmax.f32 %v1133, -1.0
        %v1135 = vadd.f32 %v1014, 1.0
        %v1136 = vadd.f32 %v1054, 1.0
        %v1137 = vadd.f32 %v1094, 1.0
        %v1138 = vadd.f32 %v1134, 1.0
        %v1139 = vmul.f32 %v967, %v1135
        %v1140 = vmul.f32 %v968, %v1136
        %v1141 = vmul.f32 %v969, %v1137
        %v1142 = vmul.f32 %v970, %v1138
        %v1143 = vpack.c.bf16 %v1140, %v1139
        %v1144 = vpack.c.bf16 %v1142, %v1141
        %v1146 = vsel %vm896, %v1143, 0
        %v1149 = vsel %vm896, %v1144, 0
        %1151 = vmatpush.bf16.xpose.msra.mxu0 0
        %1152 = vmatpush.bf16.xpose.msra.mxu0 0
        %1153 = vmatpush.bf16.xpose.msra.mxu0 0
        %1154 = vmatpush.bf16.xpose.msra.mxu0 0
        %1155 = vmatpush.bf16.xpose.msra.mxu0 0
        %1156 = vmatpush.bf16.xpose.msra.mxu0 0
        %1157 = vmatpush.bf16.xpose.msra.mxu0 %v1149
        %1158 = vmatpush.bf16.xpose.msra.mxu0 %v1146
        %1159 = vmatmul.bf16.gmra.mxu0 %v898
        %v1160 = vpop.f32.mrf.mxu0
        %v1161 = vadd.f32 %v884, %v1160
        %v1162 = vpop.f32.mrf.mxu0
        %v1163 = vadd.f32 %v889, %v1162
        %1164 = vdwg.mxu0
        %v1165 = vadd.f32 %v519, %v916
        %v1166 = vadd.f32 %v520, %v918
        %v1167 = vadd.f32 %v521, %v1161
        %v1168 = vadd.f32 %v522, %v1163
        %v1169 = vld [vmem:[#allocation7] sm:$0x1]
        %v1170 = vld [vmem:[#allocation8] sm:$0x1]
        %v1171 = vsel %vm525, %v1165, 0.0
        %1172 = vadd.xlane.f32.xlu0 %v1171
        %v1173 = vpop.xlane.xlu0 %1172
        %v1174 = vsel %vm525, %v1166, 0.0
        %1175 = vadd.xlane.f32.xlu0 %v1174
        %v1176 = vpop.xlane.xlu0 %1175
        %v1177 = vsel %vm525, %v1167, 0.0
        %1178 = vadd.xlane.f32.xlu0 %v1177
        %v1179 = vpop.xlane.xlu0 %1178
        %v1180 = vsel %vm525, %v1168, 0.0
        %1181 = vadd.xlane.f32.xlu0 %v1180
        %v1182 = vpop.xlane.xlu0 %1181
        %v1183 = vmul.f32 %v1173, %v544
        %v1184 = vmul.f32 %v1176, %v544
        %v1185 = vmul.f32 %v1179, %v544
        %v1186 = vmul.f32 %v1182, %v544
        %v1187 = vsub.f32 %v1165, %v1183
        %v1188 = vsub.f32 %v1166, %v1184
        %v1189 = vsub.f32 %v1167, %v1185
        %v1190 = vsub.f32 %v1168, %v1186
        %v1191 = vmul.f32 %v1187, %v1187
        %v1192 = vmul.f32 %v1188, %v1188
        %v1193 = vmul.f32 %v1189, %v1189
        %v1194 = vmul.f32 %v1190, %v1190
        %v1195 = vsel %vm525, %v1191, 0.0
        %1196 = vadd.xlane.f32.xlu0 %v1195
        %v1197 = vpop.xlane.xlu0 %1196
        %v1198 = vsel %vm525, %v1192, 0.0
        %1199 = vadd.xlane.f32.xlu0 %v1198
        %v1200 = vpop.xlane.xlu0 %1199
        %v1201 = vsel %vm525, %v1193, 0.0
        %1202 = vadd.xlane.f32.xlu0 %v1201
        %v1203 = vpop.xlane.xlu0 %1202
        %v1204 = vsel %vm525, %v1194, 0.0
        %1205 = vadd.xlane.f32.xlu0 %v1204
        %v1206 = vpop.xlane.xlu0 %1205
        %v1207 = vmul.f32 %v1197, %v544
        %v1208 = vmul.f32 %v1200, %v544
        %v1209 = vmul.f32 %v1203, %v544
        %v1210 = vmul.f32 %v1206, %v544
        %v1211 = vadd.f32 %v1207, 1e-05
        %v1212 = vadd.f32 %v1208, 1e-05
        %v1213 = vadd.f32 %v1209, 1e-05
        %v1214 = vadd.f32 %v1210, 1e-05
        %v1215 = vrsqrt.pop %v1211
        %v1216 = vmul.f32 %v1215, %v1211
        %v1217 = vmul.f32 %v1216, %v1215
        %v1218 = vmul.f32 0.5, %v1217
        %v1219 = vsub.f32 1.5, %v1218
        %v1220 = vmul.f32 %v1215, %v1219
        %vm1221 = vweird.f32 %v1211
        %vm1222 = vweird.f32 %v1215
        %vm1223 = vmor %vm1221, %vm1222
        %v1224 = vsel %vm1223, %v1215, %v1220
        %v1225 = vrsqrt.pop %v1212
        %v1226 = vmul.f32 %v1225, %v1212
        %v1227 = vmul.f32 %v1226, %v1225
        %v1228 = vmul.f32 0.5, %v1227
        %v1229 = vsub.f32 1.5, %v1228
        %v1230 = vmul.f32 %v1225, %v1229
        %vm1231 = vweird.f32 %v1212
        %vm1232 = vweird.f32 %v1225
        %vm1233 = vmor %vm1231, %vm1232
        %v1234 = vsel %vm1233, %v1225, %v1230
        %v1235 = vrsqrt.pop %v1213
        %v1236 = vmul.f32 %v1235, %v1213
        %v1237 = vmul.f32 %v1236, %v1235
        %v1238 = vmul.f32 0.5, %v1237
        %v1239 = vsub.f32 1.5, %v1238
        %v1240 = vmul.f32 %v1235, %v1239
        %vm1241 = vweird.f32 %v1213
        %vm1242 = vweird.f32 %v1235
        %vm1243 = vmor %vm1241, %vm1242
        %v1244 = vsel %vm1243, %v1235, %v1240
        %v1245 = vrsqrt.pop %v1214
        %v1246 = vmul.f32 %v1245, %v1214
        %v1247 = vmul.f32 %v1246, %v1245
        %v1248 = vmul.f32 0.5, %v1247
        %v1249 = vsub.f32 1.5, %v1248
        %v1250 = vmul.f32 %v1245, %v1249
        %vm1251 = vweird.f32 %v1214
        %vm1252 = vweird.f32 %v1245
        %vm1253 = vmor %vm1251, %vm1252
        %v1254 = vsel %vm1253, %v1245, %v1250
        %v1255 = vmul.f32 %v1187, %v1224
        %v1256 = vmul.f32 %v1188, %v1234
        %v1257 = vmul.f32 %v1189, %v1244
        %v1258 = vmul.f32 %v1190, %v1254
        %v1260 = vperm.slane %v1169, 0
        %v1262 = vmul.f32 %v1255, %v1260
        %v1263 = vmul.f32 %v1256, %v1260
        %v1264 = vmul.f32 %v1257, %v1260
        %v1265 = vmul.f32 %v1258, %v1260
        %v1267 = vperm.slane %v1170, 0
        %v1269 = vadd.f32 %v1262, %v1267
        %v1270 = vadd.f32 %v1263, %v1267
        %v1271 = vadd.f32 %v1264, %v1267
        %v1272 = vadd.f32 %v1265, %v1267
        %v1273 = vpack.c.bf16 %v1270, %v1269
        %v1274 = vpack.c.bf16 %v1272, %v1271
        %v1275 = vld [vmem:[%s9] sm:$0xf]
        %v1276 = vld [vmem:[%s9 + $0x4] sm:$0xf]
        %v1277 = vld [vmem:[%s9 + $0x8] sm:$0xf]
        %v1278 = vld [vmem:[%s9 + $0xc] sm:$0xf]
        %v1279 = vld [vmem:[%s10] sm:$0x1]
        %v1281 = vperm.slane %v1279, 0
        %v1287 = vunpack.c.l.b16 %v1275
        %v1288 = vunpack.c.l.b16 %v1276
        %v1289 = vunpack.c.l.b16 %v1277
        %v1290 = vunpack.c.l.b16 %v1278
        %v1291 = vpack.c.b16 %v1288, %v1287
        %v1292 = vpack.c.b16 %v1290, %v1289
        %v1296 = vsel %vm525, %v1273, 0
        %v1299 = vsel %vm525, %v1274, 0
        %1301 = vmatpush.bf16.msra.mxu0 0
        %1302 = vmatpush.bf16.msra.mxu0 0
        %1303 = vmatpush.bf16.msra.mxu0 0
        %1304 = vmatpush.bf16.msra.mxu0 0
        %1305 = vmatpush.bf16.msra.mxu0 0
        %1306 = vmatpush.bf16.msra.mxu0 0
        %1307 = vmatpush.bf16.msra.mxu0 %v1292
        %1308 = vmatpush.bf16.msra.mxu0 %v1291
        %1309 = vmatmul.bf16.gmra.mxu0 %v1296
        %v1310 = vpop.f32.mrf.mxu0
        %v1311 = vadd.f32 %v1281, %v1310
        %v1312 = vpop.f32.mrf.mxu0
        %v1313 = vadd.f32 %v1281, %v1312
        %1314 = vmatmul.bf16.gmra.mxu0 %v1299
        %v1315 = vpop.f32.mrf.mxu0
        %v1316 = vadd.f32 %v1281, %v1315
        %v1317 = vpop.f32.mrf.mxu0
        %v1318 = vadd.f32 %v1281, %v1317
        %1319 = vdwg.mxu0
        %v1320 = vmul.f32 %v1311, 0.5
        %v1321 = vmul.f32 %v1313, 0.5
        %v1322 = vmul.f32 %v1316, 0.5
        %v1323 = vmul.f32 %v1318, 0.5
        %v1324 = vmul.f32 %v1311, 0.70710677
        %v1325 = vmul.f32 %v1313, 0.70710677
        %v1326 = vmul.f32 %v1316, 0.70710677
        %v1327 = vmul.f32 %v1318, 0.70710677
        %v1328 = vmul.f32 %v1324, %v1324
        %v1329 = vmin.f32 16.0, %v1328
        %v1330 = vmul.f32 %v1329, 2.1237322e-06
        %v1331 = vadd.f32 %v1330, 0.00028619796
        %v1332 = vmul.f32 %v1329, %v1331
        %v1333 = vadd.f32 %v1332, 0.0036580483
        %v1334 = vmul.f32 %v1329, %v1333
        %v1335 = vadd.f32 %v1334, 0.05243302
        %v1336 = vmul.f32 %v1329, %v1335
        %v1337 = vadd.f32 %v1336, 0.18741608
        %v1338 = vmul.f32 %v1329, %v1337
        %v1339 = vadd.f32 %v1338, 1.1283791
        %v1340 = vmul.f32 %v1324, %v1339
        %v1341 = vmul.f32 %v1329, 3.8918573e-05
        %v1342 = vadd.f32 %v1341, 0.001143296
        %v1343 = vmul.f32 %v1329, %v1342
        %v1344 = vadd.f32 %v1343, 0.014752088
        %v1345 = vmul.f32 %v1329, %v1344
        %v1346 = vadd.f32 %v1345, 0.112945676
        %v1347 = vmul.f32 %v1329, %v1346
        %v1348 = vadd.f32 %v1347, 0.4994258
        %v1349 = vmul.f32 %v1329, %v1348
        %v1350 = vadd.f32 %v1349, 1.0
        %v1351 = vrcp.pop %v1350
        %v1352 = vmul.f32 %v1350, %v1351
        %v1353 = vsub.f32 1.0, %v1352
        %v1354 = vmul.f32 %v1351, %v1353
        %v1355 = vadd.f32 %v1351, %v1354
        %vm1356 = vweird.f32 %v1350
        %vm1357 = vweird.f32 %v1351
        %vm1358 = vmor %vm1356, %vm1357
        %v1359 = vsel %vm1358, %v1351, %v1355
        %v1360 = vand.u32 2147483647, %v1350
        %vm1361 = vcmp.eq.f32.partialorder %v1360, 8.507059e+37
        %v1362 = vand.u32 %v1350, 2147483648
        %v1363 = vor.u32 1.1754944e-38, %v1362
        %v1364 = vsel %vm1361, %v1363, %v1359
        %v1365 = vmul.f32 %v1340, %v1364
        %v1366 = vmin.f32 %v1365, 1.0
        %v1367 = vmax.f32 %v1366, -1.0
        %v1368 = vmul.f32 %v1325, %v1325
        %v1369 = vmin.f32 16.0, %v1368
        %v1370 = vmul.f32 %v1369, 2.1237322e-06
        %v1371 = vadd.f32 %v1370, 0.00028619796
        %v1372 = vmul.f32 %v1369, %v1371
        %v1373 = vadd.f32 %v1372, 0.0036580483
        %v1374 = vmul.f32 %v1369, %v1373
        %v1375 = vadd.f32 %v1374, 0.05243302
        %v1376 = vmul.f32 %v1369, %v1375
        %v1377 = vadd.f32 %v1376, 0.18741608
        %v1378 = vmul.f32 %v1369, %v1377
        %v1379 = vadd.f32 %v1378, 1.1283791
        %v1380 = vmul.f32 %v1325, %v1379
        %v1381 = vmul.f32 %v1369, 3.8918573e-05
        %v1382 = vadd.f32 %v1381, 0.001143296
        %v1383 = vmul.f32 %v1369, %v1382
        %v1384 = vadd.f32 %v1383, 0.014752088
        %v1385 = vmul.f32 %v1369, %v1384
        %v1386 = vadd.f32 %v1385, 0.112945676
        %v1387 = vmul.f32 %v1369, %v1386
        %v1388 = vadd.f32 %v1387, 0.4994258
        %v1389 = vmul.f32 %v1369, %v1388
        %v1390 = vadd.f32 %v1389, 1.0
        %v1391 = vrcp.pop %v1390
        %v1392 = vmul.f32 %v1390, %v1391
        %v1393 = vsub.f32 1.0, %v1392
        %v1394 = vmul.f32 %v1391, %v1393
        %v1395 = vadd.f32 %v1391, %v1394
        %vm1396 = vweird.f32 %v1390
        %vm1397 = vweird.f32 %v1391
        %vm1398 = vmor %vm1396, %vm1397
        %v1399 = vsel %vm1398, %v1391, %v1395
        %v1400 = vand.u32 2147483647, %v1390
        %vm1401 = vcmp.eq.f32.partialorder %v1400, 8.507059e+37
        %v1402 = vand.u32 %v1390, 2147483648
        %v1403 = vor.u32 1.1754944e-38, %v1402
        %v1404 = vsel %vm1401, %v1403, %v1399
        %v1405 = vmul.f32 %v1380, %v1404
        %v1406 = vmin.f32 %v1405, 1.0
        %v1407 = vmax.f32 %v1406, -1.0
        %v1408 = vmul.f32 %v1326, %v1326
        %v1409 = vmin.f32 16.0, %v1408
        %v1410 = vmul.f32 %v1409, 2.1237322e-06
        %v1411 = vadd.f32 %v1410, 0.00028619796
        %v1412 = vmul.f32 %v1409, %v1411
        %v1413 = vadd.f32 %v1412, 0.0036580483
        %v1414 = vmul.f32 %v1409, %v1413
        %v1415 = vadd.f32 %v1414, 0.05243302
        %v1416 = vmul.f32 %v1409, %v1415
        %v1417 = vadd.f32 %v1416, 0.18741608
        %v1418 = vmul.f32 %v1409, %v1417
        %v1419 = vadd.f32 %v1418, 1.1283791
        %v1420 = vmul.f32 %v1326, %v1419
        %v1421 = vmul.f32 %v1409, 3.8918573e-05
        %v1422 = vadd.f32 %v1421, 0.001143296
        %v1423 = vmul.f32 %v1409, %v1422
        %v1424 = vadd.f32 %v1423, 0.014752088
        %v1425 = vmul.f32 %v1409, %v1424
        %v1426 = vadd.f32 %v1425, 0.112945676
        %v1427 = vmul.f32 %v1409, %v1426
        %v1428 = vadd.f32 %v1427, 0.4994258
        %v1429 = vmul.f32 %v1409, %v1428
        %v1430 = vadd.f32 %v1429, 1.0
        %v1431 = vrcp.pop %v1430
        %v1432 = vmul.f32 %v1430, %v1431
        %v1433 = vsub.f32 1.0, %v1432
        %v1434 = vmul.f32 %v1431, %v1433
        %v1435 = vadd.f32 %v1431, %v1434
        %vm1436 = vweird.f32 %v1430
        %vm1437 = vweird.f32 %v1431
        %vm1438 = vmor %vm1436, %vm1437
        %v1439 = vsel %vm1438, %v1431, %v1435
        %v1440 = vand.u32 2147483647, %v1430
        %vm1441 = vcmp.eq.f32.partialorder %v1440, 8.507059e+37
        %v1442 = vand.u32 %v1430, 2147483648
        %v1443 = vor.u32 1.1754944e-38, %v1442
        %v1444 = vsel %vm1441, %v1443, %v1439
        %v1445 = vmul.f32 %v1420, %v1444
        %v1446 = vmin.f32 %v1445, 1.0
        %v1447 = vmax.f32 %v1446, -1.0
        %v1448 = vmul.f32 %v1327, %v1327
        %v1449 = vmin.f32 16.0, %v1448
        %v1450 = vmul.f32 %v1449, 2.1237322e-06
        %v1451 = vadd.f32 %v1450, 0.00028619796
        %v1452 = vmul.f32 %v1449, %v1451
        %v1453 = vadd.f32 %v1452, 0.0036580483
        %v1454 = vmul.f32 %v1449, %v1453
        %v1455 = vadd.f32 %v1454, 0.05243302
        %v1456 = vmul.f32 %v1449, %v1455
        %v1457 = vadd.f32 %v1456, 0.18741608
        %v1458 = vmul.f32 %v1449, %v1457
        %v1459 = vadd.f32 %v1458, 1.1283791
        %v1460 = vmul.f32 %v1327, %v1459
        %v1461 = vmul.f32 %v1449, 3.8918573e-05
        %v1462 = vadd.f32 %v1461, 0.001143296
        %v1463 = vmul.f32 %v1449, %v1462
        %v1464 = vadd.f32 %v1463, 0.014752088
        %v1465 = vmul.f32 %v1449, %v1464
        %v1466 = vadd.f32 %v1465, 0.112945676
        %v1467 = vmul.f32 %v1449, %v1466
        %v1468 = vadd.f32 %v1467, 0.4994258
        %v1469 = vmul.f32 %v1449, %v1468
        %v1470 = vadd.f32 %v1469, 1.0
        %v1471 = vrcp.pop %v1470
        %v1472 = vmul.f32 %v1470, %v1471
        %v1473 = vsub.f32 1.0, %v1472
        %v1474 = vmul.f32 %v1471, %v1473
        %v1475 = vadd.f32 %v1471, %v1474
        %vm1476 = vweird.f32 %v1470
        %vm1477 = vweird.f32 %v1471
        %vm1478 = vmor %vm1476, %vm1477
        %v1479 = vsel %vm1478, %v1471, %v1475
        %v1480 = vand.u32 2147483647, %v1470
        %vm1481 = vcmp.eq.f32.partialorder %v1480, 8.507059e+37
        %v1482 = vand.u32 %v1470, 2147483648
        %v1483 = vor.u32 1.1754944e-38, %v1482
        %v1484 = vsel %vm1481, %v1483, %v1479
        %v1485 = vmul.f32 %v1460, %v1484
        %v1486 = vmin.f32 %v1485, 1.0
        %v1487 = vmax.f32 %v1486, -1.0
        %v1488 = vadd.f32 %v1367, 1.0
        %v1489 = vadd.f32 %v1407, 1.0
        %v1490 = vadd.f32 %v1447, 1.0
        %v1491 = vadd.f32 %v1487, 1.0
        %v1492 = vmul.f32 %v1320, %v1488
        %v1493 = vmul.f32 %v1321, %v1489
        %v1494 = vmul.f32 %v1322, %v1490
        %v1495 = vmul.f32 %v1323, %v1491
        %v1496 = vpack.c.bf16 %v1493, %v1492
        %v1497 = vpack.c.bf16 %v1495, %v1494
        %v1498 = vld [vmem:[%s11] sm:$0xf]
        %v1499 = vld [vmem:[%s11 + $0x4] sm:$0xf]
        %v1500 = vld [vmem:[%s11 + $0x8] sm:$0xf]
        %v1501 = vld [vmem:[%s11 + $0xc] sm:$0xf]
        %v1502 = vld [vmem:[%s11 + $0x10] sm:$0xf]
        %v1503 = vld [vmem:[%s11 + $0x14] sm:$0xf]
        %v1504 = vld [vmem:[%s11 + $0x18] sm:$0xf]
        %v1505 = vld [vmem:[%s11 + $0x1c] sm:$0xf]
        %v1514 = vunpack.c.l.b16 %v1498
        %v1515 = vunpack.c.l.b16 %v1499
        %v1516 = vunpack.c.l.b16 %v1500
        %v1517 = vunpack.c.l.b16 %v1501
        %v1518 = vunpack.c.l.b16 %v1502
        %v1519 = vunpack.c.l.b16 %v1503
        %v1520 = vunpack.c.l.b16 %v1504
        %v1521 = vunpack.c.l.b16 %v1505
        %v1522 = vpack.c.b16 %v1515, %v1514
        %v1523 = vpack.c.b16 %v1517, %v1516
        %v1524 = vpack.c.b16 %v1519, %v1518
        %v1525 = vpack.c.b16 %v1521, %v1520
        %vm1530 = vcmask 523264
        %v1532 = vsel %vm1530, %v1496, 0
        %v1535 = vsel %vm1530, %v1497, 0
        %1537 = vmatpush.bf16.msra.mxu0 0
        %1538 = vmatpush.bf16.msra.mxu0 0
        %1539 = vmatpush.bf16.msra.mxu0 0
        %1540 = vmatpush.bf16.msra.mxu0 0
        %1541 = vmatpush.bf16.msra.mxu0 %v1525
        %1542 = vmatpush.bf16.msra.mxu0 %v1524
        %1543 = vmatpush.bf16.msra.mxu0 %v1523
        %1544 = vmatpush.bf16.msra.mxu0 %v1522
        %1545 = vmatmul.bf16.gmra.mxu0 %v1532
        %v1546 = vpop.f32.mrf.mxu0
        %v1547 = vadd.f32 0.0, %v1546
        %v1548 = vpop.f32.mrf.mxu0
        %v1549 = vadd.f32 0.0, %v1548
        %1550 = vmatmul.bf16.gmra.mxu0 %v1535
        %v1551 = vpop.f32.mrf.mxu0
        %v1552 = vadd.f32 0.0, %v1551
        %v1553 = vpop.f32.mrf.mxu0
        %v1554 = vadd.f32 0.0, %v1553
        %1555 = vdwg.mxu0
        %v1556 = vadd.f32 %v1165, %v1547
        %v1557 = vadd.f32 %v1166, %v1549
        %v1558 = vadd.f32 %v1167, %v1552
        %v1559 = vadd.f32 %v1168, %v1554
        %v1560 = vld [vmem:[%s12] sm:$0x1]
        %v1562 = vperm.slane %v1560, 0
        %v1564 = vadd.f32 %v1556, %v1562
        %v1565 = vadd.f32 %v1557, %v1562
        %v1566 = vadd.f32 %v1558, %v1562
        %v1567 = vadd.f32 %v1559, %v1562
        %1568 = vst.msk [vmem:[%s509] sm:$0xff] %vm525, %v1564
        %1569 = vst.msk [vmem:[%s509 + $0x8] sm:$0xff] %vm525, %v1565
        %1570 = vst.msk [vmem:[%s509 + $0x10] sm:$0xff] %vm525, %v1566
        %1571 = vst.msk [vmem:[%s509 + $0x18] sm:$0xff] %vm525, %v1567
        %s1572 = sand.u32 %s316, 1
        %s1573 = scalar_lea.sflag [#allocation4], %s1572
        %s1574 = sand.u32 %s316, 1
        %s1575 = smul.addr %s1574, 32
        %s1576 = scalar_lea.vmem [#allocation11], %s1575
        // Predicated region
        $region93: #{tpu_custom_call.1} parent=71 // pred_check
          %p1577 = pneg %p326
        $region94: #{tpu_custom_call.1} parent=71 // pred_check_branch
          %1579 = sbr.rel (%p1577) target = $region96
        $region95: #{tpu_custom_call.1} parent=71 // pred_region
          %s1580 = smul.u32 2, %s30
          %1582 = vsyncadd %s1573, 0
          %s1583 = smul.addr %s1580, 2
          %s1584 = smul.addr %s1583, 8
          %s1585 = scalar_lea.hbm %s13, %s1584
          %s1586 = sshll.u32 %s1576, 4
          %s1587 = int_to_ptr.vmem [resolvable:$true] %s1586
          %s1588 = sshll.u32 %s1585, 4
          %s1589 = int_to_ptr.hbm [resolvable:$true] %s1588
          %1594 = dma.vmem_to_hbm [thread:$0]  %s1587, 512, %s1589, %s1573, 128, 128, 8
        $region96: #{tpu_custom_call.1} parent=71 // pred_fallthru
          _
      $region72: #{tpu_custom_call.1} parent=5 // pred_fallthru
        _
      %p1595 = scmp.le.s32.totalorder 2, %s25
      // Predicated region
      $region97: #{tpu_custom_call.1} parent=5 // pred_check
        %p1596 = pneg %p1595
      $region98: #{tpu_custom_call.1} parent=5 // pred_check_branch
        %1598 = sbr.rel (%p1596) target = $region100
      $region99: #{tpu_custom_call.1} parent=5 // pred_region
        %s1599 = ssub.s32 %s25, 2
        // Predicated region
        $region101: #{tpu_custom_call.1} parent=99 // pred_check
          %p1600 = pneg %p332
        $region102: #{tpu_custom_call.1} parent=99 // pred_check_branch
          %1602 = sbr.rel (%p1600) target = $region104
        $region103: #{tpu_custom_call.1} parent=99 // pred_region
          %s1603 = sand.u32 %s317, 1
          %s1604 = scalar_lea.sflag [#allocation4], %s1603
          %s1605 = sand.u32 %s317, 1
          %s1606 = smul.addr %s1605, 32
          %s1607 = scalar_lea.vmem [#allocation11], %s1606
          %1609 = dma.done %s1604, 512
        $region104: #{tpu_custom_call.1} parent=99 // pred_fallthru
          _
      $region100: #{tpu_custom_call.1} parent=5 // pred_fallthru
        _
    $region6: #{tpu_custom_call.1} parent=1 // loop_footer
      %s29 = sadd.s32 1, %s25
    $region7: #{tpu_custom_call.1} parent=1 // loop_footer_branch
      %24 = sbr.rel target = $region3
    $region8: #{tpu_custom_call.1} parent=1 // loop_exit
      _
    %1610 = vsyncpa [#allocation3], 1
    %s1611 = scalar_lea.sflag [#allocation3], 1
    %1612 = vsyncpa %s1611, 1
    %1613 = vsyncpa [#allocation6], 1
    %1614 = vsyncpa [#allocation9], 1
    %1615 = vsyncpa [#allocation4], 1
    %s1616 = scalar_lea.sflag [#allocation4], 1
    %1617 = vsyncpa %s1616, 1

</llo_original>
